<compile_context>
chip_gen: v5e
topology: v5e:2x2
jax: 0.10.0
libtpu: 0.0.40
codegen_flags: <defaults>
</compile_context>

<pallas_src>
import jax
import jax.numpy as jnp
from jax.experimental import pallas as pl
from jax.experimental.pallas import tpu as pltpu

# Model hyperparameters implied by the PyTorch module
INPUT_SIZE = 6      # len(col_modelagem[0:-1])
HIDDEN_SIZE = 40
FC1_SIZE = 128
NUM_CLASSES = 1
NUM_LAYERS = 1

GATE_PAD = 128              # each gate padded to its own 128-lane block
FEAT_PAD = 8                # 6 features + ones column (bias) + zero column (head-row guard)
BIAS_COL = INPUT_SIZE       # = 6 : x[:, BIAS_COL] == 1.0  -> bias folded into bulk matmul
HEAD_ROW = FEAT_PAD - 1     # = 7 : row of wb holding fc1_b / fc_w / fc_b (x col 7 is 0)


def make_lstm1_kernel(T, BP):
    """Kernel factory: T (seq len) and BP (padded batch) are trace-time constants."""
    GP = GATE_PAD

    def kernel(x_ref,      # (T*BP, FEAT_PAD)        time-major, batch-padded, +ones col
               wb_ref,     # (FEAT_PAD, 4*GP)        rows 0:F = w_ih^T (i/f/o cols *0.5),
                           #                         row F = b_ih+b_hh (scaled),
                           #                         row 7 = [fc1_b | fc_w | fc_b]
               wa_ref,     # (GP, 4*GP + FC1_SIZE)   cols 0:512 = w_hh^T (scaled, pad rows 0),
                           #                         cols 512:640 = fc1_w^T (pad rows 0)
               out_ref):   # (BP, NUM_CLASSES)
        # ---- Bulk input projection for all timesteps. The ones-column of x picks up the
        # (pre-scaled) bias row; the zero-column guarantees the head-param row of wb
        # contributes exactly 0. Result is time-major: rows [t*BP, (t+1)*BP) belong to
        # step t, so per-step reads below are contiguous aligned slabs. ----
        pre_all = jnp.dot(x_ref[...], wb_ref[...],
                          preferred_element_type=jnp.float32)      # (T*BP, 4*GP)

        w_hh = wa_ref[:, 0:4 * GP]                                  # loop-invariant RHS

        # h/c carried with the padded gate width; pad lanes stay exactly 0:
        # gate_pad = 0 -> tanh = 0 -> i/f/o_pad = 0.5, g_pad = 0 -> c_pad = 0, h_pad = 0,
        # and zeroed W_hh pad rows guarantee no leakage into real lanes.
        h = jnp.zeros((BP, GP), jnp.float32)
        c = jnp.zeros((BP, GP), jnp.float32)

        # ---- Fully unrolled recurrence (T static). Serial chain per step:
        # one MXU matmul, one aligned slab add, ONE batched tanh, a few VPU FMAs. ----
        for t in range(T):
            gates = pre_all[t * BP:(t + 1) * BP, :] + jnp.dot(
                h, w_hh, preferred_element_type=jnp.float32)       # (BP, 4*GP), scaled
            tg = jnp.tanh(gates)        # single EUP pass over all four gate blocks
            # sigmoid(z) = 0.5*tanh(z/2) + 0.5 ; the 0.5 on z is folded into the weights.
            i = 0.5 * tg[:, 0 * GP:1 * GP] + 0.5
            f = 0.5 * tg[:, 1 * GP:2 * GP] + 0.5
            g = tg[:, 2 * GP:3 * GP]
            o = 0.5 * tg[:, 3 * GP:4 * GP] + 0.5
            c = f * c + i * g
            h = o * jnp.tanh(c)

        # ---- MLP head: relu -> fc_1 -> relu -> fc. ----
        fc1_w = wa_ref[:, 4 * GP:4 * GP + FC1_SIZE]                       # (GP, FC1)
        fc1_b = wb_ref[HEAD_ROW:HEAD_ROW + 1, 0:FC1_SIZE]                 # (1, FC1)
        fc_w_row = wb_ref[HEAD_ROW:HEAD_ROW + 1, FC1_SIZE:2 * FC1_SIZE]   # (1, FC1)
        fc_b = wb_ref[HEAD_ROW:HEAD_ROW + 1, 2 * FC1_SIZE:2 * FC1_SIZE + 1]  # (1, 1)

        hidden = jnp.maximum(h, 0.0)                                      # (BP, GP)
        hidden = jnp.dot(hidden, fc1_w,
                         preferred_element_type=jnp.float32) + fc1_b
        hidden = jnp.maximum(hidden, 0.0)                                 # (BP, FC1)
        # VPU multiply + lane reduce instead of a full MXU pass for one output column.
        out = jnp.sum(hidden * fc_w_row, axis=-1, keepdims=True) + fc_b   # (BP, 1)
        out_ref[...] = out.astype(out_ref.dtype)

    return kernel


def pack_params(params):
    """One-time weight repacking (hoist OFF the per-call path).

    Returns (wb, wa):
      wb (FEAT_PAD, 4*GP): w_ih^T per-gate blocks (i/f/o scaled by 0.5), bias row,
                           and head params (fc1_b | fc_w | fc_b) in the guard row.
      wa (GP, 4*GP+FC1):   w_hh^T per-gate blocks (scaled) | fc1_w^T, zero-padded.
    """
    w_ih, w_hh, b_ih, b_hh, fc1_w, fc1_b, fc_w, fc_b = params
    H, GP, F = HIDDEN_SIZE, GATE_PAD, INPUT_SIZE

    w_ih_t = jnp.transpose(w_ih).astype(jnp.float32)      # (F, 4H)
    w_hh_t = jnp.transpose(w_hh).astype(jnp.float32)      # (H, 4H)
    b = (b_ih + b_hh).astype(jnp.float32)                 # (4H,)

    gate_scale = (0.5, 0.5, 1.0, 0.5)                     # i, f, g, o

    wb = jnp.zeros((FEAT_PAD, 4 * GP), jnp.float32)
    wa = jnp.zeros((GP, 4 * GP + FC1_SIZE), jnp.float32)
    for k, s in enumerate(gate_scale):
        wb = wb.at[:F, k * GP:k * GP + H].set(s * w_ih_t[:, k * H:(k + 1) * H])
        wb = wb.at[BIAS_COL, k * GP:k * GP + H].set(s * b[k * H:(k + 1) * H])
        wa = wa.at[:H, k * GP:k * GP + H].set(s * w_hh_t[:, k * H:(k + 1) * H])
    wa = wa.at[:H, 4 * GP:4 * GP + FC1_SIZE].set(jnp.transpose(fc1_w).astype(jnp.float32))

    # Head params live in the guard row; x's column HEAD_ROW is always 0 so they never
    # leak into the input projection.
    wb = wb.at[HEAD_ROW, 0:FC1_SIZE].set(fc1_b.astype(jnp.float32))
    wb = wb.at[HEAD_ROW, FC1_SIZE:2 * FC1_SIZE].set(fc_w.reshape(-1).astype(jnp.float32))
    wb = wb.at[HEAD_ROW, 2 * FC1_SIZE].set(fc_b.astype(jnp.float32)[0])
    return wb, wa


def lstm1_forward(x_btf, packed):
    """x_btf: (B, T, INPUT_SIZE) batch-first, like the PyTorch module."""
    wb, wa = packed
    B, T, F = x_btf.shape
    assert F == INPUT_SIZE
    BP = ((B + 7) // 8) * 8   # batch padded to a sublane tile

    # Time-major, batch-padded, feature-augmented input (ones column = folded bias,
    # zero column = head-row guard). Tiny (<1 KiB) so the transpose is negligible.
    xt = jnp.transpose(x_btf.astype(jnp.float32), (1, 0, 2))          # (T, B, F)
    x_pad = jnp.zeros((T, BP, FEAT_PAD), jnp.float32)
    x_pad = x_pad.at[:, :B, :F].set(xt)
    x_pad = x_pad.at[:, :, BIAS_COL].set(1.0)
    x_flat = x_pad.reshape(T * BP, FEAT_PAD)

    vmem = pl.BlockSpec(memory_space=pltpu.MemorySpace.VMEM)
    out_pad = pl.pallas_call(
        make_lstm1_kernel(T, BP),
        out_shape=jax.ShapeDtypeStruct((BP, NUM_CLASSES), jnp.float32),
        in_specs=[vmem, vmem, vmem],
        out_specs=vmem,
    )(x_flat, wb, wa)
    return out_pad[:B]


def init_params(key):
    """Deterministic init matching PyTorch default shapes/ranges."""
    ks = jax.random.split(key, 8)
    k_lstm = 1.0 / jnp.sqrt(HIDDEN_SIZE)
    k_fc1 = 1.0 / jnp.sqrt(HIDDEN_SIZE)
    k_fc = 1.0 / jnp.sqrt(FC1_SIZE)
    u = lambda k, shape, bound: jax.random.uniform(k, shape, jnp.float32, -bound, bound)
    w_ih = u(ks[0], (4 * HIDDEN_SIZE, INPUT_SIZE), k_lstm)
    w_hh = u(ks[1], (4 * HIDDEN_SIZE, HIDDEN_SIZE), k_lstm)
    b_ih = u(ks[2], (4 * HIDDEN_SIZE,), k_lstm)
    b_hh = u(ks[3], (4 * HIDDEN_SIZE,), k_lstm)
    fc1_w = u(ks[4], (FC1_SIZE, HIDDEN_SIZE), k_fc1)
    fc1_b = u(ks[5], (FC1_SIZE,), k_fc1)
    fc_w = u(ks[6], (NUM_CLASSES, FC1_SIZE), k_fc)
    fc_b = u(ks[7], (NUM_CLASSES,), k_fc)
    return (w_ih, w_hh, b_ih, b_hh, fc1_w, fc1_b, fc_w, fc_b)


def lstm1_reference(x_btf, params):
    """Pure-JAX reference of the same forward pass (for verification)."""
    w_ih, w_hh, b_ih, b_hh, fc1_w, fc1_b, fc_w, fc_b = params
    B, T, _ = x_btf.shape
    H = HIDDEN_SIZE
    h = jnp.zeros((B, H), jnp.float32)
    c = jnp.zeros((B, H), jnp.float32)
    for t in range(T):
        gates = x_btf[:, t, :] @ w_ih.T + h @ w_hh.T + b_ih + b_hh
        i = jax.nn.sigmoid(gates[:, 0:H])
        f = jax.nn.sigmoid(gates[:, H:2 * H])
        g = jnp.tanh(gates[:, 2 * H:3 * H])
        o = jax.nn.sigmoid(gates[:, 3 * H:4 * H])
        c = f * c + i * g
        h = o * jnp.tanh(c)
    out = jnp.maximum(h, 0.0)
    out = jnp.maximum(out @ fc1_w.T + fc1_b, 0.0)
    return out @ fc_w.T + fc_b


if __name__ == "__main__":
    key = jax.random.PRNGKey(0)
    k_param, k_x = jax.random.split(key)

    B, T = 4, 8
    params = init_params(k_param)
    x = jax.random.normal(k_x, (B, T, INPUT_SIZE), jnp.float32)

    # One-time packing, off the hot path.
    packed = jax.block_until_ready(pack_params(params))

    fwd = jax.jit(lstm1_forward)
    out = jax.block_until_ready(fwd(x, packed))

    ref = lstm1_reference(x, params)
    assert out.shape == (B, NUM_CLASSES)
    assert jnp.allclose(out, ref, rtol=1e-2, atol=1e-2), (out, ref)

    print("KERNEL_OK")
</pallas_src>

<mosaic_0001>
module attributes {stable_mosaic.version = 11 : i64} {
  func.func @kernel(%arg0: memref<64x8xf32, #tpu.memory_space<vmem>>, %arg1: memref<8x512xf32, #tpu.memory_space<vmem>>, %arg2: memref<128x640xf32, #tpu.memory_space<vmem>>, %arg3: memref<8x1xf32, #tpu.memory_space<vmem>>) attributes {dimension_semantics = [], scalar_prefetch = 0 : i64, scratch_operands = 0 : i64, tpu.core_type = #tpu.core_type<tc>} {
    %c0 = arith.constant 0 : index
    %c0_0 = arith.constant 0 : index
    %0 = vector.load %arg0[%c0, %c0_0] : memref<64x8xf32, #tpu.memory_space<vmem>>, vector<64x8xf32>
    %c0_1 = arith.constant 0 : index
    %c0_2 = arith.constant 0 : index
    %1 = vector.load %arg1[%c0_1, %c0_2] : memref<8x512xf32, #tpu.memory_space<vmem>>, vector<8x512xf32>
    %cst = arith.constant dense<0.000000e+00> : vector<64x512xf32>
    %2 = tpu.matmul %0, %1, %cst {dimension_numbers = #tpu.dot_dimension_numbers<[1], [0], [0], [1], [0, 0, 1, 1], [], []>} : vector<64x8xf32>, vector<8x512xf32>, vector<64x512xf32> -> vector<64x512xf32>
    %c0_3 = arith.constant 0 : index
    %c0_4 = arith.constant 0 : index
    %3 = vector.load %arg2[%c0_3, %c0_4] : memref<128x640xf32, #tpu.memory_space<vmem>>, vector<128x512xf32>
    %cst_5 = arith.constant 0.000000e+00 : f32
    %4 = vector.broadcast %cst_5 : f32 to vector<8x128xf32>
    %cst_6 = arith.constant 0.000000e+00 : f32
    %5 = vector.broadcast %cst_6 : f32 to vector<8x128xf32>
    %6 = vector.extract_strided_slice %2 {offsets = [0, 0], sizes = [8, 512], strides = [1, 1]} : vector<64x512xf32> to vector<8x512xf32>
    %cst_7 = arith.constant dense<0.000000e+00> : vector<8x512xf32>
    %7 = tpu.matmul %4, %3, %cst_7 {dimension_numbers = #tpu.dot_dimension_numbers<[1], [0], [0], [1], [0, 0, 1, 1], [], []>} : vector<8x128xf32>, vector<128x512xf32>, vector<8x512xf32> -> vector<8x512xf32>
    %8 = arith.addf %6, %7 : vector<8x512xf32>
    %9 = math.tanh %8 : vector<8x512xf32>
    %10 = vector.extract_strided_slice %9 {offsets = [0, 0], sizes = [8, 128], strides = [1, 1]} : vector<8x512xf32> to vector<8x128xf32>
    %cst_8 = arith.constant 5.000000e-01 : f32
    %11 = vector.broadcast %cst_8 : f32 to vector<8x128xf32>
    %12 = arith.mulf %11, %10 : vector<8x128xf32>
    %cst_9 = arith.constant 5.000000e-01 : f32
    %13 = vector.broadcast %cst_9 : f32 to vector<8x128xf32>
    %14 = arith.addf %12, %13 : vector<8x128xf32>
    %15 = vector.extract_strided_slice %9 {offsets = [0, 128], sizes = [8, 128], strides = [1, 1]} : vector<8x512xf32> to vector<8x128xf32>
    %cst_10 = arith.constant 5.000000e-01 : f32
    %16 = vector.broadcast %cst_10 : f32 to vector<8x128xf32>
    %17 = arith.mulf %16, %15 : vector<8x128xf32>
    %cst_11 = arith.constant 5.000000e-01 : f32
    %18 = vector.broadcast %cst_11 : f32 to vector<8x128xf32>
    %19 = arith.addf %17, %18 : vector<8x128xf32>
    %20 = vector.extract_strided_slice %9 {offsets = [0, 256], sizes = [8, 128], strides = [1, 1]} : vector<8x512xf32> to vector<8x128xf32>
    %21 = vector.extract_strided_slice %9 {offsets = [0, 384], sizes = [8, 128], strides = [1, 1]} : vector<8x512xf32> to vector<8x128xf32>
    %cst_12 = arith.constant 5.000000e-01 : f32
    %22 = vector.broadcast %cst_12 : f32 to vector<8x128xf32>
    %23 = arith.mulf %22, %21 : vector<8x128xf32>
    %cst_13 = arith.constant 5.000000e-01 : f32
    %24 = vector.broadcast %cst_13 : f32 to vector<8x128xf32>
    %25 = arith.addf %23, %24 : vector<8x128xf32>
    %26 = arith.mulf %19, %5 : vector<8x128xf32>
    %27 = arith.mulf %14, %20 : vector<8x128xf32>
    %28 = arith.addf %26, %27 : vector<8x128xf32>
    %29 = math.tanh %28 : vector<8x128xf32>
    %30 = arith.mulf %25, %29 : vector<8x128xf32>
    %31 = vector.extract_strided_slice %2 {offsets = [8, 0], sizes = [8, 512], strides = [1, 1]} : vector<64x512xf32> to vector<8x512xf32>
    %cst_14 = arith.constant dense<0.000000e+00> : vector<8x512xf32>
    %32 = tpu.matmul %30, %3, %cst_14 {dimension_numbers = #tpu.dot_dimension_numbers<[1], [0], [0], [1], [0, 0, 1, 1], [], []>} : vector<8x128xf32>, vector<128x512xf32>, vector<8x512xf32> -> vector<8x512xf32>
    %33 = arith.addf %31, %32 : vector<8x512xf32>
    %34 = math.tanh %33 : vector<8x512xf32>
    %35 = vector.extract_strided_slice %34 {offsets = [0, 0], sizes = [8, 128], strides = [1, 1]} : vector<8x512xf32> to vector<8x128xf32>
    %cst_15 = arith.constant 5.000000e-01 : f32
    %36 = vector.broadcast %cst_15 : f32 to vector<8x128xf32>
    %37 = arith.mulf %36, %35 : vector<8x128xf32>
    %cst_16 = arith.constant 5.000000e-01 : f32
    %38 = vector.broadcast %cst_16 : f32 to vector<8x128xf32>
    %39 = arith.addf %37, %38 : vector<8x128xf32>
    %40 = vector.extract_strided_slice %34 {offsets = [0, 128], sizes = [8, 128], strides = [1, 1]} : vector<8x512xf32> to vector<8x128xf32>
    %cst_17 = arith.constant 5.000000e-01 : f32
    %41 = vector.broadcast %cst_17 : f32 to vector<8x128xf32>
    %42 = arith.mulf %41, %40 : vector<8x128xf32>
    %cst_18 = arith.constant 5.000000e-01 : f32
    %43 = vector.broadcast %cst_18 : f32 to vector<8x128xf32>
    %44 = arith.addf %42, %43 : vector<8x128xf32>
    %45 = vector.extract_strided_slice %34 {offsets = [0, 256], sizes = [8, 128], strides = [1, 1]} : vector<8x512xf32> to vector<8x128xf32>
    %46 = vector.extract_strided_slice %34 {offsets = [0, 384], sizes = [8, 128], strides = [1, 1]} : vector<8x512xf32> to vector<8x128xf32>
    %cst_19 = arith.constant 5.000000e-01 : f32
    %47 = vector.broadcast %cst_19 : f32 to vector<8x128xf32>
    %48 = arith.mulf %47, %46 : vector<8x128xf32>
    %cst_20 = arith.constant 5.000000e-01 : f32
    %49 = vector.broadcast %cst_20 : f32 to vector<8x128xf32>
    %50 = arith.addf %48, %49 : vector<8x128xf32>
    %51 = arith.mulf %44, %28 : vector<8x128xf32>
    %52 = arith.mulf %39, %45 : vector<8x128xf32>
    %53 = arith.addf %51, %52 : vector<8x128xf32>
    %54 = math.tanh %53 : vector<8x128xf32>
    %55 = arith.mulf %50, %54 : vector<8x128xf32>
    %56 = vector.extract_strided_slice %2 {offsets = [16, 0], sizes = [8, 512], strides = [1, 1]} : vector<64x512xf32> to vector<8x512xf32>
    %cst_21 = arith.constant dense<0.000000e+00> : vector<8x512xf32>
    %57 = tpu.matmul %55, %3, %cst_21 {dimension_numbers = #tpu.dot_dimension_numbers<[1], [0], [0], [1], [0, 0, 1, 1], [], []>} : vector<8x128xf32>, vector<128x512xf32>, vector<8x512xf32> -> vector<8x512xf32>
    %58 = arith.addf %56, %57 : vector<8x512xf32>
    %59 = math.tanh %58 : vector<8x512xf32>
    %60 = vector.extract_strided_slice %59 {offsets = [0, 0], sizes = [8, 128], strides = [1, 1]} : vector<8x512xf32> to vector<8x128xf32>
    %cst_22 = arith.constant 5.000000e-01 : f32
    %61 = vector.broadcast %cst_22 : f32 to vector<8x128xf32>
    %62 = arith.mulf %61, %60 : vector<8x128xf32>
    %cst_23 = arith.constant 5.000000e-01 : f32
    %63 = vector.broadcast %cst_23 : f32 to vector<8x128xf32>
    %64 = arith.addf %62, %63 : vector<8x128xf32>
    %65 = vector.extract_strided_slice %59 {offsets = [0, 128], sizes = [8, 128], strides = [1, 1]} : vector<8x512xf32> to vector<8x128xf32>
    %cst_24 = arith.constant 5.000000e-01 : f32
    %66 = vector.broadcast %cst_24 : f32 to vector<8x128xf32>
    %67 = arith.mulf %66, %65 : vector<8x128xf32>
    %cst_25 = arith.constant 5.000000e-01 : f32
    %68 = vector.broadcast %cst_25 : f32 to vector<8x128xf32>
    %69 = arith.addf %67, %68 : vector<8x128xf32>
    %70 = vector.extract_strided_slice %59 {offsets = [0, 256], sizes = [8, 128], strides = [1, 1]} : vector<8x512xf32> to vector<8x128xf32>
    %71 = vector.extract_strided_slice %59 {offsets = [0, 384], sizes = [8, 128], strides = [1, 1]} : vector<8x512xf32> to vector<8x128xf32>
    %cst_26 = arith.constant 5.000000e-01 : f32
    %72 = vector.broadcast %cst_26 : f32 to vector<8x128xf32>
    %73 = arith.mulf %72, %71 : vector<8x128xf32>
    %cst_27 = arith.constant 5.000000e-01 : f32
    %74 = vector.broadcast %cst_27 : f32 to vector<8x128xf32>
    %75 = arith.addf %73, %74 : vector<8x128xf32>
    %76 = arith.mulf %69, %53 : vector<8x128xf32>
    %77 = arith.mulf %64, %70 : vector<8x128xf32>
    %78 = arith.addf %76, %77 : vector<8x128xf32>
    %79 = math.tanh %78 : vector<8x128xf32>
    %80 = arith.mulf %75, %79 : vector<8x128xf32>
    %81 = vector.extract_strided_slice %2 {offsets = [24, 0], sizes = [8, 512], strides = [1, 1]} : vector<64x512xf32> to vector<8x512xf32>
    %cst_28 = arith.constant dense<0.000000e+00> : vector<8x512xf32>
    %82 = tpu.matmul %80, %3, %cst_28 {dimension_numbers = #tpu.dot_dimension_numbers<[1], [0], [0], [1], [0, 0, 1, 1], [], []>} : vector<8x128xf32>, vector<128x512xf32>, vector<8x512xf32> -> vector<8x512xf32>
    %83 = arith.addf %81, %82 : vector<8x512xf32>
    %84 = math.tanh %83 : vector<8x512xf32>
    %85 = vector.extract_strided_slice %84 {offsets = [0, 0], sizes = [8, 128], strides = [1, 1]} : vector<8x512xf32> to vector<8x128xf32>
    %cst_29 = arith.constant 5.000000e-01 : f32
    %86 = vector.broadcast %cst_29 : f32 to vector<8x128xf32>
    %87 = arith.mulf %86, %85 : vector<8x128xf32>
    %cst_30 = arith.constant 5.000000e-01 : f32
    %88 = vector.broadcast %cst_30 : f32 to vector<8x128xf32>
    %89 = arith.addf %87, %88 : vector<8x128xf32>
    %90 = vector.extract_strided_slice %84 {offsets = [0, 128], sizes = [8, 128], strides = [1, 1]} : vector<8x512xf32> to vector<8x128xf32>
    %cst_31 = arith.constant 5.000000e-01 : f32
    %91 = vector.broadcast %cst_31 : f32 to vector<8x128xf32>
    %92 = arith.mulf %91, %90 : vector<8x128xf32>
    %cst_32 = arith.constant 5.000000e-01 : f32
    %93 = vector.broadcast %cst_32 : f32 to vector<8x128xf32>
    %94 = arith.addf %92, %93 : vector<8x128xf32>
    %95 = vector.extract_strided_slice %84 {offsets = [0, 256], sizes = [8, 128], strides = [1, 1]} : vector<8x512xf32> to vector<8x128xf32>
    %96 = vector.extract_strided_slice %84 {offsets = [0, 384], sizes = [8, 128], strides = [1, 1]} : vector<8x512xf32> to vector<8x128xf32>
    %cst_33 = arith.constant 5.000000e-01 : f32
    %97 = vector.broadcast %cst_33 : f32 to vector<8x128xf32>
    %98 = arith.mulf %97, %96 : vector<8x128xf32>
    %cst_34 = arith.constant 5.000000e-01 : f32
    %99 = vector.broadcast %cst_34 : f32 to vector<8x128xf32>
    %100 = arith.addf %98, %99 : vector<8x128xf32>
    %101 = arith.mulf %94, %78 : vector<8x128xf32>
    %102 = arith.mulf %89, %95 : vector<8x128xf32>
    %103 = arith.addf %101, %102 : vector<8x128xf32>
    %104 = math.tanh %103 : vector<8x128xf32>
    %105 = arith.mulf %100, %104 : vector<8x128xf32>
    %106 = vector.extract_strided_slice %2 {offsets = [32, 0], sizes = [8, 512], strides = [1, 1]} : vector<64x512xf32> to vector<8x512xf32>
    %cst_35 = arith.constant dense<0.000000e+00> : vector<8x512xf32>
    %107 = tpu.matmul %105, %3, %cst_35 {dimension_numbers = #tpu.dot_dimension_numbers<[1], [0], [0], [1], [0, 0, 1, 1], [], []>} : vector<8x128xf32>, vector<128x512xf32>, vector<8x512xf32> -> vector<8x512xf32>
    %108 = arith.addf %106, %107 : vector<8x512xf32>
    %109 = math.tanh %108 : vector<8x512xf32>
    %110 = vector.extract_strided_slice %109 {offsets = [0, 0], sizes = [8, 128], strides = [1, 1]} : vector<8x512xf32> to vector<8x128xf32>
    %cst_36 = arith.constant 5.000000e-01 : f32
    %111 = vector.broadcast %cst_36 : f32 to vector<8x128xf32>
    %112 = arith.mulf %111, %110 : vector<8x128xf32>
    %cst_37 = arith.constant 5.000000e-01 : f32
    %113 = vector.broadcast %cst_37 : f32 to vector<8x128xf32>
    %114 = arith.addf %112, %113 : vector<8x128xf32>
    %115 = vector.extract_strided_slice %109 {offsets = [0, 128], sizes = [8, 128], strides = [1, 1]} : vector<8x512xf32> to vector<8x128xf32>
    %cst_38 = arith.constant 5.000000e-01 : f32
    %116 = vector.broadcast %cst_38 : f32 to vector<8x128xf32>
    %117 = arith.mulf %116, %115 : vector<8x128xf32>
    %cst_39 = arith.constant 5.000000e-01 : f32
    %118 = vector.broadcast %cst_39 : f32 to vector<8x128xf32>
    %119 = arith.addf %117, %118 : vector<8x128xf32>
    %120 = vector.extract_strided_slice %109 {offsets = [0, 256], sizes = [8, 128], strides = [1, 1]} : vector<8x512xf32> to vector<8x128xf32>
    %121 = vector.extract_strided_slice %109 {offsets = [0, 384], sizes = [8, 128], strides = [1, 1]} : vector<8x512xf32> to vector<8x128xf32>
    %cst_40 = arith.constant 5.000000e-01 : f32
    %122 = vector.broadcast %cst_40 : f32 to vector<8x128xf32>
    %123 = arith.mulf %122, %121 : vector<8x128xf32>
    %cst_41 = arith.constant 5.000000e-01 : f32
    %124 = vector.broadcast %cst_41 : f32 to vector<8x128xf32>
    %125 = arith.addf %123, %124 : vector<8x128xf32>
    %126 = arith.mulf %119, %103 : vector<8x128xf32>
    %127 = arith.mulf %114, %120 : vector<8x128xf32>
    %128 = arith.addf %126, %127 : vector<8x128xf32>
    %129 = math.tanh %128 : vector<8x128xf32>
    %130 = arith.mulf %125, %129 : vector<8x128xf32>
    %131 = vector.extract_strided_slice %2 {offsets = [40, 0], sizes = [8, 512], strides = [1, 1]} : vector<64x512xf32> to vector<8x512xf32>
    %cst_42 = arith.constant dense<0.000000e+00> : vector<8x512xf32>
    %132 = tpu.matmul %130, %3, %cst_42 {dimension_numbers = #tpu.dot_dimension_numbers<[1], [0], [0], [1], [0, 0, 1, 1], [], []>} : vector<8x128xf32>, vector<128x512xf32>, vector<8x512xf32> -> vector<8x512xf32>
    %133 = arith.addf %131, %132 : vector<8x512xf32>
    %134 = math.tanh %133 : vector<8x512xf32>
    %135 = vector.extract_strided_slice %134 {offsets = [0, 0], sizes = [8, 128], strides = [1, 1]} : vector<8x512xf32> to vector<8x128xf32>
    %cst_43 = arith.constant 5.000000e-01 : f32
    %136 = vector.broadcast %cst_43 : f32 to vector<8x128xf32>
    %137 = arith.mulf %136, %135 : vector<8x128xf32>
    %cst_44 = arith.constant 5.000000e-01 : f32
    %138 = vector.broadcast %cst_44 : f32 to vector<8x128xf32>
    %139 = arith.addf %137, %138 : vector<8x128xf32>
    %140 = vector.extract_strided_slice %134 {offsets = [0, 128], sizes = [8, 128], strides = [1, 1]} : vector<8x512xf32> to vector<8x128xf32>
    %cst_45 = arith.constant 5.000000e-01 : f32
    %141 = vector.broadcast %cst_45 : f32 to vector<8x128xf32>
    %142 = arith.mulf %141, %140 : vector<8x128xf32>
    %cst_46 = arith.constant 5.000000e-01 : f32
    %143 = vector.broadcast %cst_46 : f32 to vector<8x128xf32>
    %144 = arith.addf %142, %143 : vector<8x128xf32>
    %145 = vector.extract_strided_slice %134 {offsets = [0, 256], sizes = [8, 128], strides = [1, 1]} : vector<8x512xf32> to vector<8x128xf32>
    %146 = vector.extract_strided_slice %134 {offsets = [0, 384], sizes = [8, 128], strides = [1, 1]} : vector<8x512xf32> to vector<8x128xf32>
    %cst_47 = arith.constant 5.000000e-01 : f32
    %147 = vector.broadcast %cst_47 : f32 to vector<8x128xf32>
    %148 = arith.mulf %147, %146 : vector<8x128xf32>
    %cst_48 = arith.constant 5.000000e-01 : f32
    %149 = vector.broadcast %cst_48 : f32 to vector<8x128xf32>
    %150 = arith.addf %148, %149 : vector<8x128xf32>
    %151 = arith.mulf %144, %128 : vector<8x128xf32>
    %152 = arith.mulf %139, %145 : vector<8x128xf32>
    %153 = arith.addf %151, %152 : vector<8x128xf32>
    %154 = math.tanh %153 : vector<8x128xf32>
    %155 = arith.mulf %150, %154 : vector<8x128xf32>
    %156 = vector.extract_strided_slice %2 {offsets = [48, 0], sizes = [8, 512], strides = [1, 1]} : vector<64x512xf32> to vector<8x512xf32>
    %cst_49 = arith.constant dense<0.000000e+00> : vector<8x512xf32>
    %157 = tpu.matmul %155, %3, %cst_49 {dimension_numbers = #tpu.dot_dimension_numbers<[1], [0], [0], [1], [0, 0, 1, 1], [], []>} : vector<8x128xf32>, vector<128x512xf32>, vector<8x512xf32> -> vector<8x512xf32>
    %158 = arith.addf %156, %157 : vector<8x512xf32>
    %159 = math.tanh %158 : vector<8x512xf32>
    %160 = vector.extract_strided_slice %159 {offsets = [0, 0], sizes = [8, 128], strides = [1, 1]} : vector<8x512xf32> to vector<8x128xf32>
    %cst_50 = arith.constant 5.000000e-01 : f32
    %161 = vector.broadcast %cst_50 : f32 to vector<8x128xf32>
    %162 = arith.mulf %161, %160 : vector<8x128xf32>
    %cst_51 = arith.constant 5.000000e-01 : f32
    %163 = vector.broadcast %cst_51 : f32 to vector<8x128xf32>
    %164 = arith.addf %162, %163 : vector<8x128xf32>
    %165 = vector.extract_strided_slice %159 {offsets = [0, 128], sizes = [8, 128], strides = [1, 1]} : vector<8x512xf32> to vector<8x128xf32>
    %cst_52 = arith.constant 5.000000e-01 : f32
    %166 = vector.broadcast %cst_52 : f32 to vector<8x128xf32>
    %167 = arith.mulf %166, %165 : vector<8x128xf32>
    %cst_53 = arith.constant 5.000000e-01 : f32
    %168 = vector.broadcast %cst_53 : f32 to vector<8x128xf32>
    %169 = arith.addf %167, %168 : vector<8x128xf32>
    %170 = vector.extract_strided_slice %159 {offsets = [0, 256], sizes = [8, 128], strides = [1, 1]} : vector<8x512xf32> to vector<8x128xf32>
    %171 = vector.extract_strided_slice %159 {offsets = [0, 384], sizes = [8, 128], strides = [1, 1]} : vector<8x512xf32> to vector<8x128xf32>
    %cst_54 = arith.constant 5.000000e-01 : f32
    %172 = vector.broadcast %cst_54 : f32 to vector<8x128xf32>
    %173 = arith.mulf %172, %171 : vector<8x128xf32>
    %cst_55 = arith.constant 5.000000e-01 : f32
    %174 = vector.broadcast %cst_55 : f32 to vector<8x128xf32>
    %175 = arith.addf %173, %174 : vector<8x128xf32>
    %176 = arith.mulf %169, %153 : vector<8x128xf32>
    %177 = arith.mulf %164, %170 : vector<8x128xf32>
    %178 = arith.addf %176, %177 : vector<8x128xf32>
    %179 = math.tanh %178 : vector<8x128xf32>
    %180 = arith.mulf %175, %179 : vector<8x128xf32>
    %181 = vector.extract_strided_slice %2 {offsets = [56, 0], sizes = [8, 512], strides = [1, 1]} : vector<64x512xf32> to vector<8x512xf32>
    %cst_56 = arith.constant dense<0.000000e+00> : vector<8x512xf32>
    %182 = tpu.matmul %180, %3, %cst_56 {dimension_numbers = #tpu.dot_dimension_numbers<[1], [0], [0], [1], [0, 0, 1, 1], [], []>} : vector<8x128xf32>, vector<128x512xf32>, vector<8x512xf32> -> vector<8x512xf32>
    %183 = arith.addf %181, %182 : vector<8x512xf32>
    %184 = math.tanh %183 : vector<8x512xf32>
    %185 = vector.extract_strided_slice %184 {offsets = [0, 0], sizes = [8, 128], strides = [1, 1]} : vector<8x512xf32> to vector<8x128xf32>
    %cst_57 = arith.constant 5.000000e-01 : f32
    %186 = vector.broadcast %cst_57 : f32 to vector<8x128xf32>
    %187 = arith.mulf %186, %185 : vector<8x128xf32>
    %cst_58 = arith.constant 5.000000e-01 : f32
    %188 = vector.broadcast %cst_58 : f32 to vector<8x128xf32>
    %189 = arith.addf %187, %188 : vector<8x128xf32>
    %190 = vector.extract_strided_slice %184 {offsets = [0, 128], sizes = [8, 128], strides = [1, 1]} : vector<8x512xf32> to vector<8x128xf32>
    %cst_59 = arith.constant 5.000000e-01 : f32
    %191 = vector.broadcast %cst_59 : f32 to vector<8x128xf32>
    %192 = arith.mulf %191, %190 : vector<8x128xf32>
    %cst_60 = arith.constant 5.000000e-01 : f32
    %193 = vector.broadcast %cst_60 : f32 to vector<8x128xf32>
    %194 = arith.addf %192, %193 : vector<8x128xf32>
    %195 = vector.extract_strided_slice %184 {offsets = [0, 256], sizes = [8, 128], strides = [1, 1]} : vector<8x512xf32> to vector<8x128xf32>
    %196 = vector.extract_strided_slice %184 {offsets = [0, 384], sizes = [8, 128], strides = [1, 1]} : vector<8x512xf32> to vector<8x128xf32>
    %cst_61 = arith.constant 5.000000e-01 : f32
    %197 = vector.broadcast %cst_61 : f32 to vector<8x128xf32>
    %198 = arith.mulf %197, %196 : vector<8x128xf32>
    %cst_62 = arith.constant 5.000000e-01 : f32
    %199 = vector.broadcast %cst_62 : f32 to vector<8x128xf32>
    %200 = arith.addf %198, %199 : vector<8x128xf32>
    %201 = arith.mulf %194, %178 : vector<8x128xf32>
    %202 = arith.mulf %189, %195 : vector<8x128xf32>
    %203 = arith.addf %201, %202 : vector<8x128xf32>
    %204 = math.tanh %203 : vector<8x128xf32>
    %205 = arith.mulf %200, %204 : vector<8x128xf32>
    %c0_63 = arith.constant 0 : index
    %c512 = arith.constant 512 : index
    %206 = vector.load %arg2[%c0_63, %c512] : memref<128x640xf32, #tpu.memory_space<vmem>>, vector<128x128xf32>
    %c7 = arith.constant 7 : index
    %c0_64 = arith.constant 0 : index
    %207 = vector.load %arg1[%c7, %c0_64] : memref<8x512xf32, #tpu.memory_space<vmem>>, vector<1x128xf32>
    %c7_65 = arith.constant 7 : index
    %c128 = arith.constant 128 : index
    %208 = vector.load %arg1[%c7_65, %c128] : memref<8x512xf32, #tpu.memory_space<vmem>>, vector<1x128xf32>
    %c7_66 = arith.constant 7 : index
    %c256 = arith.constant 256 : index
    %209 = vector.load %arg1[%c7_66, %c256] : memref<8x512xf32, #tpu.memory_space<vmem>>, vector<1x1xf32>
    %cst_67 = arith.constant 0.000000e+00 : f32
    %210 = vector.broadcast %cst_67 : f32 to vector<8x128xf32>
    %211 = arith.maximumf %205, %210 : vector<8x128xf32>
    %cst_68 = arith.constant dense<0.000000e+00> : vector<8x128xf32>
    %212 = tpu.matmul %211, %206, %cst_68 {dimension_numbers = #tpu.dot_dimension_numbers<[1], [0], [0], [1], [0, 0, 1, 1], [], []>} : vector<8x128xf32>, vector<128x128xf32>, vector<8x128xf32> -> vector<8x128xf32>
    %213 = vector.broadcast %207 : vector<1x128xf32> to vector<8x128xf32>
    %214 = arith.addf %212, %213 : vector<8x128xf32>
    %cst_69 = arith.constant 0.000000e+00 : f32
    %215 = vector.broadcast %cst_69 : f32 to vector<8x128xf32>
    %216 = arith.maximumf %214, %215 : vector<8x128xf32>
    %217 = vector.broadcast %208 : vector<1x128xf32> to vector<8x128xf32>
    %218 = arith.mulf %216, %217 : vector<8x128xf32>
    %cst_70 = arith.constant dense<0.000000e+00> : vector<8xf32>
    %219 = vector.multi_reduction <add>, %218, %cst_70 [1] : vector<8x128xf32> to vector<8xf32>
    %220 = vector.shape_cast %219 : vector<8xf32> to vector<8x1xf32>
    %221 = vector.broadcast %209 : vector<1x1xf32> to vector<8x1xf32>
    %222 = arith.addf %220, %221 : vector<8x1xf32>
    %c0_71 = arith.constant 0 : index
    %c0_72 = arith.constant 0 : index
    %223 = vector.load %arg3[%c0_71, %c0_72] : memref<8x1xf32, #tpu.memory_space<vmem>>, vector<8x1xf32>
    tpu.vector_store %arg3[%c0_71, %c0_72], %222 {strides = array<i32>} : memref<8x1xf32, #tpu.memory_space<vmem>>, vector<8x1xf32>,
    return
  }
}

</mosaic_0001>

<llo_original>
// kernel: lstm1_forward.1
$region0: #{lstm1_forward.1}
  #allocation0 [shape = 'u32[]', space=smem, size = 0x4, offset = 0x4, fixed_abs, tag = 'smem constant byte address 0x4 - core index']
  #allocation1 [shape = 'u32[72,128]{1,0:T(1,128)}', space=vmem, size = 0x9000, scoped, tag = 'internal scratch']
  %s0 = inlined_call_operand.vmem [shape: f32[64,8], index: 0, kind: input, shape index: {}]
  %s1 = inlined_call_operand.vmem [shape: f32[8,512], index: 1, kind: input, shape index: {}]
  %s2 = inlined_call_operand.hbm [shape: f32[128,640], index: 2, kind: input, shape index: {}]
  %s3 = inlined_call_operand.vmem [shape: f32[8,1], index: 3, kind: output, shape index: {}]
  %s4 = sld [smem:[#allocation0]]
  $region26: #{lstm1_forward.1} parent=0
    _
  %s6 = ssub.s32 1, %s4
  %s7 = scalar_select 0, %s6, %s4
  $region1: #{lstm1_forward.1} parent=0
    #allocation2 [shape = 'u8[327680]{0}', space=vmem, size = 0x50000, scoped, tag = 'input window, operand 2, single buffered']
    #allocation3 [shape = 's32[1]{0}', space=sflag, size = 0x4, scoped, tag = 'scoped memory for lstm1_forward.1']
    %8 = vsyncpa [#allocation3], 0
    // Predicated region
    $region2: #{lstm1_forward.1} parent=1 // pred_check
      _
    $region3: #{lstm1_forward.1} parent=1 // pred_check_branch
      %10 = sbr.rel (0) target = $region5
    $region4: #{lstm1_forward.1} parent=1 // pred_region
      _
    $region5: #{lstm1_forward.1} parent=1 // pred_fallthru
      _
    // Predicated region
    $region6: #{lstm1_forward.1} parent=1 // pred_check
      _
    $region7: #{lstm1_forward.1} parent=1 // pred_check_branch
      %12 = sbr.rel (0) target = $region9
    $region8: #{lstm1_forward.1} parent=1 // pred_region
      _
    $region9: #{lstm1_forward.1} parent=1 // pred_fallthru
      _
    // Predicated region
    $region10: #{lstm1_forward.1} parent=1 // pred_check
      _
    $region11: #{lstm1_forward.1} parent=1 // pred_check_branch
      %14 = sbr.rel (0) target = $region13
    $region12: #{lstm1_forward.1} parent=1 // pred_region
      %16 = vsyncadd [#allocation3], 0
      %s17 = sshll.u32 %s2, 4
      %s18 = int_to_ptr.hbm [resolvable:$true] %s17
      %s19 = sshll.u32 [#allocation2], 4
      %s20 = int_to_ptr.vmem [resolvable:$true] %s19
      %25 = dma.hbm_to_vmem [thread:$0]  %s18, 10240, %s20, [#allocation3], 640, 640, 40
    $region13: #{lstm1_forward.1} parent=1 // pred_fallthru
      _
    // Predicated region
    $region14: #{lstm1_forward.1} parent=1 // pred_check
      _
    $region15: #{lstm1_forward.1} parent=1 // pred_check_branch
      %27 = sbr.rel (0) target = $region17
    $region16: #{lstm1_forward.1} parent=1 // pred_region
      %29 = dma.done [#allocation3], 10240
    $region17: #{lstm1_forward.1} parent=1 // pred_fallthru
      _
    %v30 = vld [vmem:[%s0] sm:$0xff]
    %v31 = vld [vmem:[%s0 + $0x8] sm:$0xff]
    %v32 = vld [vmem:[%s0 + $0x10] sm:$0xff]
    %v33 = vld [vmem:[%s0 + $0x18] sm:$0xff]
    %v34 = vld [vmem:[%s0 + $0x20] sm:$0xff]
    %v35 = vld [vmem:[%s0 + $0x28] sm:$0xff]
    %v36 = vld [vmem:[%s0 + $0x30] sm:$0xff]
    %v37 = vld [vmem:[%s0 + $0x38] sm:$0xff]
    %v38 = vld [vmem:[%s1] sm:$0xff]
    %v39 = vld [vmem:[%s1 + $0x8] sm:$0xff]
    %v40 = vld [vmem:[%s1 + $0x10] sm:$0xff]
    %v41 = vld [vmem:[%s1 + $0x18] sm:$0xff]
    %vm42 = vcmask 64512
    %v44 = vsel %vm42, %v30, 0
    %v47 = vsel %vm42, %v31, 0
    %v50 = vsel %vm42, %v32, 0
    %v53 = vsel %vm42, %v33, 0
    %v56 = vsel %vm42, %v34, 0
    %v59 = vsel %vm42, %v35, 0
    %v62 = vsel %vm42, %v36, 0
    %v65 = vsel %vm42, %v37, 0
    %67 = vmatpush.msra.mxu0 0.0
    %68 = vmatpush.msra.mxu0 0.0
    %69 = vmatpush.msra.mxu0 0.0
    %70 = vmatpush.msra.mxu0 0.0
    %71 = vmatpush.msra.mxu0 0.0
    %72 = vmatpush.msra.mxu0 0.0
    %73 = vmatpush.msra.mxu0 0.0
    %74 = vmatpush.msra.mxu0 0.0
    %75 = vmatpush.msra.mxu0 0.0
    %76 = vmatpush.msra.mxu0 0.0
    %77 = vmatpush.msra.mxu0 0.0
    %78 = vmatpush.msra.mxu0 0.0
    %79 = vmatpush.msra.mxu0 0.0
    %80 = vmatpush.msra.mxu0 0.0
    %81 = vmatpush.msra.mxu0 0.0
    %82 = vmatpush.msra.mxu0 %v38
    %83 = vmatmul.f32.gmra.mxu0 %v44
    %v84 = vpop.f32.mrf.mxu0
    %v85 = vadd.f32 0.0, %v84
    %86 = vmatmul.f32.gmra.mxu0 %v47
    %v87 = vpop.f32.mrf.mxu0
    %v88 = vadd.f32 0.0, %v87
    %89 = vmatmul.f32.gmra.mxu0 %v50
    %v90 = vpop.f32.mrf.mxu0
    %v91 = vadd.f32 0.0, %v90
    %92 = vmatmul.f32.gmra.mxu0 %v53
    %v93 = vpop.f32.mrf.mxu0
    %v94 = vadd.f32 0.0, %v93
    %95 = vmatmul.f32.gmra.mxu0 %v56
    %v96 = vpop.f32.mrf.mxu0
    %v97 = vadd.f32 0.0, %v96
    %98 = vmatmul.f32.gmra.mxu0 %v59
    %v99 = vpop.f32.mrf.mxu0
    %v100 = vadd.f32 0.0, %v99
    %101 = vmatmul.f32.gmra.mxu0 %v62
    %v102 = vpop.f32.mrf.mxu0
    %v103 = vadd.f32 0.0, %v102
    %104 = vmatmul.f32.gmra.mxu0 %v65
    %v105 = vpop.f32.mrf.mxu0
    %v106 = vadd.f32 0.0, %v105
    %107 = vdwg.mxu0
    %108 = vmatpush.msra.mxu0 0.0
    %109 = vmatpush.msra.mxu0 0.0
    %110 = vmatpush.msra.mxu0 0.0
    %111 = vmatpush.msra.mxu0 0.0
    %112 = vmatpush.msra.mxu0 0.0
    %113 = vmatpush.msra.mxu0 0.0
    %114 = vmatpush.msra.mxu0 0.0
    %115 = vmatpush.msra.mxu0 0.0
    %116 = vmatpush.msra.mxu0 0.0
    %117 = vmatpush.msra.mxu0 0.0
    %118 = vmatpush.msra.mxu0 0.0
    %119 = vmatpush.msra.mxu0 0.0
    %120 = vmatpush.msra.mxu0 0.0
    %121 = vmatpush.msra.mxu0 0.0
    %122 = vmatpush.msra.mxu0 0.0
    %123 = vmatpush.msra.mxu0 %v39
    %124 = vmatmul.f32.gmra.mxu0 %v44
    %v125 = vpop.f32.mrf.mxu0
    %v126 = vadd.f32 0.0, %v125
    %127 = vmatmul.f32.gmra.mxu0 %v47
    %v128 = vpop.f32.mrf.mxu0
    %v129 = vadd.f32 0.0, %v128
    %130 = vmatmul.f32.gmra.mxu0 %v50
    %v131 = vpop.f32.mrf.mxu0
    %v132 = vadd.f32 0.0, %v131
    %133 = vmatmul.f32.gmra.mxu0 %v53
    %v134 = vpop.f32.mrf.mxu0
    %v135 = vadd.f32 0.0, %v134
    %136 = vmatmul.f32.gmra.mxu0 %v56
    %v137 = vpop.f32.mrf.mxu0
    %v138 = vadd.f32 0.0, %v137
    %139 = vmatmul.f32.gmra.mxu0 %v59
    %v140 = vpop.f32.mrf.mxu0
    %v141 = vadd.f32 0.0, %v140
    %142 = vmatmul.f32.gmra.mxu0 %v62
    %v143 = vpop.f32.mrf.mxu0
    %v144 = vadd.f32 0.0, %v143
    %145 = vmatmul.f32.gmra.mxu0 %v65
    %v146 = vpop.f32.mrf.mxu0
    %v147 = vadd.f32 0.0, %v146
    %148 = vdwg.mxu0
    %149 = vmatpush.msra.mxu0 0.0
    %150 = vmatpush.msra.mxu0 0.0
    %151 = vmatpush.msra.mxu0 0.0
    %152 = vmatpush.msra.mxu0 0.0
    %153 = vmatpush.msra.mxu0 0.0
    %154 = vmatpush.msra.mxu0 0.0
    %155 = vmatpush.msra.mxu0 0.0
    %156 = vmatpush.msra.mxu0 0.0
    %157 = vmatpush.msra.mxu0 0.0
    %158 = vmatpush.msra.mxu0 0.0
    %159 = vmatpush.msra.mxu0 0.0
    %160 = vmatpush.msra.mxu0 0.0
    %161 = vmatpush.msra.mxu0 0.0
    %162 = vmatpush.msra.mxu0 0.0
    %163 = vmatpush.msra.mxu0 0.0
    %164 = vmatpush.msra.mxu0 %v40
    %165 = vmatmul.f32.gmra.mxu0 %v44
    %v166 = vpop.f32.mrf.mxu0
    %v167 = vadd.f32 0.0, %v166
    %168 = vmatmul.f32.gmra.mxu0 %v47
    %v169 = vpop.f32.mrf.mxu0
    %v170 = vadd.f32 0.0, %v169
    %171 = vmatmul.f32.gmra.mxu0 %v50
    %v172 = vpop.f32.mrf.mxu0
    %v173 = vadd.f32 0.0, %v172
    %174 = vmatmul.f32.gmra.mxu0 %v53
    %v175 = vpop.f32.mrf.mxu0
    %v176 = vadd.f32 0.0, %v175
    %177 = vmatmul.f32.gmra.mxu0 %v56
    %v178 = vpop.f32.mrf.mxu0
    %v179 = vadd.f32 0.0, %v178
    %180 = vmatmul.f32.gmra.mxu0 %v59
    %v181 = vpop.f32.mrf.mxu0
    %v182 = vadd.f32 0.0, %v181
    %183 = vmatmul.f32.gmra.mxu0 %v62
    %v184 = vpop.f32.mrf.mxu0
    %v185 = vadd.f32 0.0, %v184
    %186 = vmatmul.f32.gmra.mxu0 %v65
    %v187 = vpop.f32.mrf.mxu0
    %v188 = vadd.f32 0.0, %v187
    %189 = vdwg.mxu0
    %190 = vmatpush.msra.mxu0 0.0
    %191 = vmatpush.msra.mxu0 0.0
    %192 = vmatpush.msra.mxu0 0.0
    %193 = vmatpush.msra.mxu0 0.0
    %194 = vmatpush.msra.mxu0 0.0
    %195 = vmatpush.msra.mxu0 0.0
    %196 = vmatpush.msra.mxu0 0.0
    %197 = vmatpush.msra.mxu0 0.0
    %198 = vmatpush.msra.mxu0 0.0
    %199 = vmatpush.msra.mxu0 0.0
    %200 = vmatpush.msra.mxu0 0.0
    %201 = vmatpush.msra.mxu0 0.0
    %202 = vmatpush.msra.mxu0 0.0
    %203 = vmatpush.msra.mxu0 0.0
    %204 = vmatpush.msra.mxu0 0.0
    %205 = vmatpush.msra.mxu0 %v41
    %206 = vmatmul.f32.gmra.mxu0 %v44
    %v207 = vpop.f32.mrf.mxu0
    %v208 = vadd.f32 0.0, %v207
    %209 = vmatmul.f32.gmra.mxu0 %v47
    %v210 = vpop.f32.mrf.mxu0
    %v211 = vadd.f32 0.0, %v210
    %212 = vmatmul.f32.gmra.mxu0 %v50
    %v213 = vpop.f32.mrf.mxu0
    %v214 = vadd.f32 0.0, %v213
    %215 = vmatmul.f32.gmra.mxu0 %v53
    %v216 = vpop.f32.mrf.mxu0
    %v217 = vadd.f32 0.0, %v216
    %218 = vmatmul.f32.gmra.mxu0 %v56
    %v219 = vpop.f32.mrf.mxu0
    %v220 = vadd.f32 0.0, %v219
    %221 = vmatmul.f32.gmra.mxu0 %v59
    %v222 = vpop.f32.mrf.mxu0
    %v223 = vadd.f32 0.0, %v222
    %224 = vmatmul.f32.gmra.mxu0 %v62
    %v225 = vpop.f32.mrf.mxu0
    %v226 = vadd.f32 0.0, %v225
    %227 = vmatmul.f32.gmra.mxu0 %v65
    %v228 = vpop.f32.mrf.mxu0
    %v229 = vadd.f32 0.0, %v228
    %230 = vdwg.mxu0
    %v231 = vld [vmem:[#allocation2] sm:$0xff]
    %v232 = vld [vmem:[#allocation2 + $0x8] sm:$0xff]
    %v233 = vld [vmem:[#allocation2 + $0x10] sm:$0xff]
    %v234 = vld [vmem:[#allocation2 + $0x18] sm:$0xff]
    %v235 = vld [vmem:[#allocation2 + $0x28] sm:$0xff]
    %v236 = vld [vmem:[#allocation2 + $0x30] sm:$0xff]
    %v237 = vld [vmem:[#allocation2 + $0x38] sm:$0xff]
    %v238 = vld [vmem:[#allocation2 + $0x40] sm:$0xff]
    %v239 = vld [vmem:[#allocation2 + $0x50] sm:$0xff]
    %v240 = vld [vmem:[#allocation2 + $0x58] sm:$0xff]
    %v241 = vld [vmem:[#allocation2 + $0x60] sm:$0xff]
    %v242 = vld [vmem:[#allocation2 + $0x68] sm:$0xff]
    %v243 = vld [vmem:[#allocation2 + $0x78] sm:$0xff]
    %v244 = vld [vmem:[#allocation2 + $0x80] sm:$0xff]
    %v245 = vld [vmem:[#allocation2 + $0x88] sm:$0xff]
    %v246 = vld [vmem:[#allocation2 + $0x90] sm:$0xff]
    %v247 = vld [vmem:[#allocation2 + $0xa0] sm:$0xff]
    %v248 = vld [vmem:[#allocation2 + $0xa8] sm:$0xff]
    %v249 = vld [vmem:[#allocation2 + $0xb0] sm:$0xff]
    %v250 = vld [vmem:[#allocation2 + $0xb8] sm:$0xff]
    %v251 = vld [vmem:[#allocation2 + $0xc8] sm:$0xff]
    %v252 = vld [vmem:[#allocation2 + $0xd0] sm:$0xff]
    %v253 = vld [vmem:[#allocation2 + $0xd8] sm:$0xff]
    %v254 = vld [vmem:[#allocation2 + $0xe0] sm:$0xff]
    %v255 = vld [vmem:[#allocation2 + $0xf0] sm:$0xff]
    %v256 = vld [vmem:[#allocation2 + $0xf8] sm:$0xff]
    %v257 = vld [vmem:[#allocation2 + $0x100] sm:$0xff]
    %v258 = vld [vmem:[#allocation2 + $0x108] sm:$0xff]
    %v259 = vld [vmem:[#allocation2 + $0x118] sm:$0xff]
    %v260 = vld [vmem:[#allocation2 + $0x120] sm:$0xff]
    %v261 = vld [vmem:[#allocation2 + $0x128] sm:$0xff]
    %v262 = vld [vmem:[#allocation2 + $0x130] sm:$0xff]
    %v263 = vld [vmem:[#allocation2 + $0x140] sm:$0xff]
    %v264 = vld [vmem:[#allocation2 + $0x148] sm:$0xff]
    %v265 = vld [vmem:[#allocation2 + $0x150] sm:$0xff]
    %v266 = vld [vmem:[#allocation2 + $0x158] sm:$0xff]
    %v267 = vld [vmem:[#allocation2 + $0x168] sm:$0xff]
    %v268 = vld [vmem:[#allocation2 + $0x170] sm:$0xff]
    %v269 = vld [vmem:[#allocation2 + $0x178] sm:$0xff]
    %v270 = vld [vmem:[#allocation2 + $0x180] sm:$0xff]
    %v271 = vld [vmem:[#allocation2 + $0x190] sm:$0xff]
    %v272 = vld [vmem:[#allocation2 + $0x198] sm:$0xff]
    %v273 = vld [vmem:[#allocation2 + $0x1a0] sm:$0xff]
    %v274 = vld [vmem:[#allocation2 + $0x1a8] sm:$0xff]
    %v275 = vld [vmem:[#allocation2 + $0x1b8] sm:$0xff]
    %v276 = vld [vmem:[#allocation2 + $0x1c0] sm:$0xff]
    %v277 = vld [vmem:[#allocation2 + $0x1c8] sm:$0xff]
    %v278 = vld [vmem:[#allocation2 + $0x1d0] sm:$0xff]
    %v279 = vld [vmem:[#allocation2 + $0x1e0] sm:$0xff]
    %v280 = vld [vmem:[#allocation2 + $0x1e8] sm:$0xff]
    %v281 = vld [vmem:[#allocation2 + $0x1f0] sm:$0xff]
    %v282 = vld [vmem:[#allocation2 + $0x1f8] sm:$0xff]
    %v283 = vld [vmem:[#allocation2 + $0x208] sm:$0xff]
    %v284 = vld [vmem:[#allocation2 + $0x210] sm:$0xff]
    %v285 = vld [vmem:[#allocation2 + $0x218] sm:$0xff]
    %v286 = vld [vmem:[#allocation2 + $0x220] sm:$0xff]
    %v287 = vld [vmem:[#allocation2 + $0x230] sm:$0xff]
    %v288 = vld [vmem:[#allocation2 + $0x238] sm:$0xff]
    %v289 = vld [vmem:[#allocation2 + $0x240] sm:$0xff]
    %v290 = vld [vmem:[#allocation2 + $0x248] sm:$0xff]
    %v291 = vld [vmem:[#allocation2 + $0x258] sm:$0xff]
    %v292 = vld [vmem:[#allocation2 + $0x260] sm:$0xff]
    %v293 = vld [vmem:[#allocation2 + $0x268] sm:$0xff]
    %v294 = vld [vmem:[#allocation2 + $0x270] sm:$0xff]
    %295 = vmatpush.msra.mxu0 %v291
    %296 = vmatpush.msra.mxu0 %v287
    %297 = vmatpush.msra.mxu0 %v283
    %298 = vmatpush.msra.mxu0 %v279
    %299 = vmatpush.msra.mxu0 %v275
    %300 = vmatpush.msra.mxu0 %v271
    %301 = vmatpush.msra.mxu0 %v267
    %302 = vmatpush.msra.mxu0 %v263
    %303 = vmatpush.msra.mxu0 %v259
    %304 = vmatpush.msra.mxu0 %v255
    %305 = vmatpush.msra.mxu0 %v251
    %306 = vmatpush.msra.mxu0 %v247
    %307 = vmatpush.msra.mxu0 %v243
    %308 = vmatpush.msra.mxu0 %v239
    %309 = vmatpush.msra.mxu0 %v235
    %310 = vmatpush.msra.mxu0 %v231
    %311 = vmatmul.f32.gmra.mxu0 0.0
    %v312 = vpop.f32.mrf.mxu0
    %v313 = vadd.f32 0.0, %v312
    %314 = vdwg.mxu0
    %315 = vmatpush.msra.mxu0 %v292
    %316 = vmatpush.msra.mxu0 %v288
    %317 = vmatpush.msra.mxu0 %v284
    %318 = vmatpush.msra.mxu0 %v280
    %319 = vmatpush.msra.mxu0 %v276
    %320 = vmatpush.msra.mxu0 %v272
    %321 = vmatpush.msra.mxu0 %v268
    %322 = vmatpush.msra.mxu0 %v264
    %323 = vmatpush.msra.mxu0 %v260
    %324 = vmatpush.msra.mxu0 %v256
    %325 = vmatpush.msra.mxu0 %v252
    %326 = vmatpush.msra.mxu0 %v248
    %327 = vmatpush.msra.mxu0 %v244
    %328 = vmatpush.msra.mxu0 %v240
    %329 = vmatpush.msra.mxu0 %v236
    %330 = vmatpush.msra.mxu0 %v232
    %331 = vmatmul.f32.gmra.mxu0 0.0
    %v332 = vpop.f32.mrf.mxu0
    %v333 = vadd.f32 0.0, %v332
    %334 = vdwg.mxu0
    %335 = vmatpush.msra.mxu0 %v293
    %336 = vmatpush.msra.mxu0 %v289
    %337 = vmatpush.msra.mxu0 %v285
    %338 = vmatpush.msra.mxu0 %v281
    %339 = vmatpush.msra.mxu0 %v277
    %340 = vmatpush.msra.mxu0 %v273
    %341 = vmatpush.msra.mxu0 %v269
    %342 = vmatpush.msra.mxu0 %v265
    %343 = vmatpush.msra.mxu0 %v261
    %344 = vmatpush.msra.mxu0 %v257
    %345 = vmatpush.msra.mxu0 %v253
    %346 = vmatpush.msra.mxu0 %v249
    %347 = vmatpush.msra.mxu0 %v245
    %348 = vmatpush.msra.mxu0 %v241
    %349 = vmatpush.msra.mxu0 %v237
    %350 = vmatpush.msra.mxu0 %v233
    %351 = vmatmul.f32.gmra.mxu0 0.0
    %v352 = vpop.f32.mrf.mxu0
    %v353 = vadd.f32 0.0, %v352
    %354 = vdwg.mxu0
    %355 = vmatpush.msra.mxu0 %v294
    %356 = vmatpush.msra.mxu0 %v290
    %357 = vmatpush.msra.mxu0 %v286
    %358 = vmatpush.msra.mxu0 %v282
    %359 = vmatpush.msra.mxu0 %v278
    %360 = vmatpush.msra.mxu0 %v274
    %361 = vmatpush.msra.mxu0 %v270
    %362 = vmatpush.msra.mxu0 %v266
    %363 = vmatpush.msra.mxu0 %v262
    %364 = vmatpush.msra.mxu0 %v258
    %365 = vmatpush.msra.mxu0 %v254
    %366 = vmatpush.msra.mxu0 %v250
    %367 = vmatpush.msra.mxu0 %v246
    %368 = vmatpush.msra.mxu0 %v242
    %369 = vmatpush.msra.mxu0 %v238
    %370 = vmatpush.msra.mxu0 %v234
    %371 = vmatmul.f32.gmra.mxu0 0.0
    %v372 = vpop.f32.mrf.mxu0
    %v373 = vadd.f32 0.0, %v372
    %374 = vdwg.mxu0
    %v375 = vadd.f32 %v85, %v313
    %v376 = vadd.f32 %v126, %v333
    %v377 = vadd.f32 %v167, %v353
    %v378 = vadd.f32 %v208, %v373
    %v379 = vtanh.pop %v375
    %v380 = vtanh.pop %v376
    %v381 = vtanh.pop %v377
    %v382 = vtanh.pop %v378
    %v383 = vmul.f32 %v379, 0.5
    %v384 = vadd.f32 %v383, 0.5
    %v385 = vmul.f32 %v380, 0.5
    %v386 = vadd.f32 %v385, 0.5
    %v387 = vmul.f32 %v382, 0.5
    %v388 = vadd.f32 %v387, 0.5
    %v389 = vmul.f32 %v386, 0.0
    %v390 = vmul.f32 %v384, %v381
    %v391 = vadd.f32 %v389, %v390
    %v392 = vtanh.pop %v391
    %v393 = vmul.f32 %v388, %v392
    %394 = vmatpush.msra.mxu0 %v291
    %395 = vmatpush.msra.mxu0 %v287
    %396 = vmatpush.msra.mxu0 %v283
    %397 = vmatpush.msra.mxu0 %v279
    %398 = vmatpush.msra.mxu0 %v275
    %399 = vmatpush.msra.mxu0 %v271
    %400 = vmatpush.msra.mxu0 %v267
    %401 = vmatpush.msra.mxu0 %v263
    %402 = vmatpush.msra.mxu0 %v259
    %403 = vmatpush.msra.mxu0 %v255
    %404 = vmatpush.msra.mxu0 %v251
    %405 = vmatpush.msra.mxu0 %v247
    %406 = vmatpush.msra.mxu0 %v243
    %407 = vmatpush.msra.mxu0 %v239
    %408 = vmatpush.msra.mxu0 %v235
    %409 = vmatpush.msra.mxu0 %v231
    %410 = vmatmul.f32.gmra.mxu0 %v393
    %v411 = vpop.f32.mrf.mxu0
    %v412 = vadd.f32 0.0, %v411
    %413 = vdwg.mxu0
    %414 = vmatpush.msra.mxu0 %v292
    %415 = vmatpush.msra.mxu0 %v288
    %416 = vmatpush.msra.mxu0 %v284
    %417 = vmatpush.msra.mxu0 %v280
    %418 = vmatpush.msra.mxu0 %v276
    %419 = vmatpush.msra.mxu0 %v272
    %420 = vmatpush.msra.mxu0 %v268
    %421 = vmatpush.msra.mxu0 %v264
    %422 = vmatpush.msra.mxu0 %v260
    %423 = vmatpush.msra.mxu0 %v256
    %424 = vmatpush.msra.mxu0 %v252
    %425 = vmatpush.msra.mxu0 %v248
    %426 = vmatpush.msra.mxu0 %v244
    %427 = vmatpush.msra.mxu0 %v240
    %428 = vmatpush.msra.mxu0 %v236
    %429 = vmatpush.msra.mxu0 %v232
    %430 = vmatmul.f32.gmra.mxu0 %v393
    %v431 = vpop.f32.mrf.mxu0
    %v432 = vadd.f32 0.0, %v431
    %433 = vdwg.mxu0
    %434 = vmatpush.msra.mxu0 %v293
    %435 = vmatpush.msra.mxu0 %v289
    %436 = vmatpush.msra.mxu0 %v285
    %437 = vmatpush.msra.mxu0 %v281
    %438 = vmatpush.msra.mxu0 %v277
    %439 = vmatpush.msra.mxu0 %v273
    %440 = vmatpush.msra.mxu0 %v269
    %441 = vmatpush.msra.mxu0 %v265
    %442 = vmatpush.msra.mxu0 %v261
    %443 = vmatpush.msra.mxu0 %v257
    %444 = vmatpush.msra.mxu0 %v253
    %445 = vmatpush.msra.mxu0 %v249
    %446 = vmatpush.msra.mxu0 %v245
    %447 = vmatpush.msra.mxu0 %v241
    %448 = vmatpush.msra.mxu0 %v237
    %449 = vmatpush.msra.mxu0 %v233
    %450 = vmatmul.f32.gmra.mxu0 %v393
    %v451 = vpop.f32.mrf.mxu0
    %v452 = vadd.f32 0.0, %v451
    %453 = vdwg.mxu0
    %454 = vmatpush.msra.mxu0 %v294
    %455 = vmatpush.msra.mxu0 %v290
    %456 = vmatpush.msra.mxu0 %v286
    %457 = vmatpush.msra.mxu0 %v282
    %458 = vmatpush.msra.mxu0 %v278
    %459 = vmatpush.msra.mxu0 %v274
    %460 = vmatpush.msra.mxu0 %v270
    %461 = vmatpush.msra.mxu0 %v266
    %462 = vmatpush.msra.mxu0 %v262
    %463 = vmatpush.msra.mxu0 %v258
    %464 = vmatpush.msra.mxu0 %v254
    %465 = vmatpush.msra.mxu0 %v250
    %466 = vmatpush.msra.mxu0 %v246
    %467 = vmatpush.msra.mxu0 %v242
    %468 = vmatpush.msra.mxu0 %v238
    %469 = vmatpush.msra.mxu0 %v234
    %470 = vmatmul.f32.gmra.mxu0 %v393
    %v471 = vpop.f32.mrf.mxu0
    %v472 = vadd.f32 0.0, %v471
    %473 = vdwg.mxu0
    %v474 = vadd.f32 %v88, %v412
    %v475 = vadd.f32 %v129, %v432
    %v476 = vadd.f32 %v170, %v452
    %v477 = vadd.f32 %v211, %v472
    %v478 = vtanh.pop %v474
    %v479 = vtanh.pop %v475
    %v480 = vtanh.pop %v476
    %v481 = vtanh.pop %v477
    %v482 = vmul.f32 %v478, 0.5
    %v483 = vadd.f32 %v482, 0.5
    %v484 = vmul.f32 %v479, 0.5
    %v485 = vadd.f32 %v484, 0.5
    %v486 = vmul.f32 %v481, 0.5
    %v487 = vadd.f32 %v486, 0.5
    %v488 = vmul.f32 %v485, %v391
    %v489 = vmul.f32 %v483, %v480
    %v490 = vadd.f32 %v488, %v489
    %v491 = vtanh.pop %v490
    %v492 = vmul.f32 %v487, %v491
    %493 = vmatpush.msra.mxu0 %v291
    %494 = vmatpush.msra.mxu0 %v287
    %495 = vmatpush.msra.mxu0 %v283
    %496 = vmatpush.msra.mxu0 %v279
    %497 = vmatpush.msra.mxu0 %v275
    %498 = vmatpush.msra.mxu0 %v271
    %499 = vmatpush.msra.mxu0 %v267
    %500 = vmatpush.msra.mxu0 %v263
    %501 = vmatpush.msra.mxu0 %v259
    %502 = vmatpush.msra.mxu0 %v255
    %503 = vmatpush.msra.mxu0 %v251
    %504 = vmatpush.msra.mxu0 %v247
    %505 = vmatpush.msra.mxu0 %v243
    %506 = vmatpush.msra.mxu0 %v239
    %507 = vmatpush.msra.mxu0 %v235
    %508 = vmatpush.msra.mxu0 %v231
    %509 = vmatmul.f32.gmra.mxu0 %v492
    %v510 = vpop.f32.mrf.mxu0
    %v511 = vadd.f32 0.0, %v510
    %512 = vdwg.mxu0
    %513 = vmatpush.msra.mxu0 %v292
    %514 = vmatpush.msra.mxu0 %v288
    %515 = vmatpush.msra.mxu0 %v284
    %516 = vmatpush.msra.mxu0 %v280
    %517 = vmatpush.msra.mxu0 %v276
    %518 = vmatpush.msra.mxu0 %v272
    %519 = vmatpush.msra.mxu0 %v268
    %520 = vmatpush.msra.mxu0 %v264
    %521 = vmatpush.msra.mxu0 %v260
    %522 = vmatpush.msra.mxu0 %v256
    %523 = vmatpush.msra.mxu0 %v252
    %524 = vmatpush.msra.mxu0 %v248
    %525 = vmatpush.msra.mxu0 %v244
    %526 = vmatpush.msra.mxu0 %v240
    %527 = vmatpush.msra.mxu0 %v236
    %528 = vmatpush.msra.mxu0 %v232
    %529 = vmatmul.f32.gmra.mxu0 %v492
    %v530 = vpop.f32.mrf.mxu0
    %v531 = vadd.f32 0.0, %v530
    %532 = vdwg.mxu0
    %533 = vmatpush.msra.mxu0 %v293
    %534 = vmatpush.msra.mxu0 %v289
    %535 = vmatpush.msra.mxu0 %v285
    %536 = vmatpush.msra.mxu0 %v281
    %537 = vmatpush.msra.mxu0 %v277
    %538 = vmatpush.msra.mxu0 %v273
    %539 = vmatpush.msra.mxu0 %v269
    %540 = vmatpush.msra.mxu0 %v265
    %541 = vmatpush.msra.mxu0 %v261
    %542 = vmatpush.msra.mxu0 %v257
    %543 = vmatpush.msra.mxu0 %v253
    %544 = vmatpush.msra.mxu0 %v249
    %545 = vmatpush.msra.mxu0 %v245
    %546 = vmatpush.msra.mxu0 %v241
    %547 = vmatpush.msra.mxu0 %v237
    %548 = vmatpush.msra.mxu0 %v233
    %549 = vmatmul.f32.gmra.mxu0 %v492
    %v550 = vpop.f32.mrf.mxu0
    %v551 = vadd.f32 0.0, %v550
    %552 = vdwg.mxu0
    %553 = vmatpush.msra.mxu0 %v294
    %554 = vmatpush.msra.mxu0 %v290
    %555 = vmatpush.msra.mxu0 %v286
    %556 = vmatpush.msra.mxu0 %v282
    %557 = vmatpush.msra.mxu0 %v278
    %558 = vmatpush.msra.mxu0 %v274
    %559 = vmatpush.msra.mxu0 %v270
    %560 = vmatpush.msra.mxu0 %v266
    %561 = vmatpush.msra.mxu0 %v262
    %562 = vmatpush.msra.mxu0 %v258
    %563 = vmatpush.msra.mxu0 %v254
    %564 = vmatpush.msra.mxu0 %v250
    %565 = vmatpush.msra.mxu0 %v246
    %566 = vmatpush.msra.mxu0 %v242
    %567 = vmatpush.msra.mxu0 %v238
    %568 = vmatpush.msra.mxu0 %v234
    %569 = vmatmul.f32.gmra.mxu0 %v492
    %v570 = vpop.f32.mrf.mxu0
    %v571 = vadd.f32 0.0, %v570
    %572 = vdwg.mxu0
    %v573 = vadd.f32 %v91, %v511
    %v574 = vadd.f32 %v132, %v531
    %v575 = vadd.f32 %v173, %v551
    %v576 = vadd.f32 %v214, %v571
    %v577 = vtanh.pop %v573
    %v578 = vtanh.pop %v574
    %v579 = vtanh.pop %v575
    %v580 = vtanh.pop %v576
    %v581 = vmul.f32 %v577, 0.5
    %v582 = vadd.f32 %v581, 0.5
    %v583 = vmul.f32 %v578, 0.5
    %v584 = vadd.f32 %v583, 0.5
    %v585 = vmul.f32 %v580, 0.5
    %v586 = vadd.f32 %v585, 0.5
    %v587 = vmul.f32 %v584, %v490
    %v588 = vmul.f32 %v582, %v579
    %v589 = vadd.f32 %v587, %v588
    %v590 = vtanh.pop %v589
    %v591 = vmul.f32 %v586, %v590
    %592 = vmatpush.msra.mxu0 %v291
    %593 = vmatpush.msra.mxu0 %v287
    %594 = vmatpush.msra.mxu0 %v283
    %595 = vmatpush.msra.mxu0 %v279
    %596 = vmatpush.msra.mxu0 %v275
    %597 = vmatpush.msra.mxu0 %v271
    %598 = vmatpush.msra.mxu0 %v267
    %599 = vmatpush.msra.mxu0 %v263
    %600 = vmatpush.msra.mxu0 %v259
    %601 = vmatpush.msra.mxu0 %v255
    %602 = vmatpush.msra.mxu0 %v251
    %603 = vmatpush.msra.mxu0 %v247
    %604 = vmatpush.msra.mxu0 %v243
    %605 = vmatpush.msra.mxu0 %v239
    %606 = vmatpush.msra.mxu0 %v235
    %607 = vmatpush.msra.mxu0 %v231
    %608 = vmatmul.f32.gmra.mxu0 %v591
    %v609 = vpop.f32.mrf.mxu0
    %v610 = vadd.f32 0.0, %v609
    %611 = vdwg.mxu0
    %612 = vmatpush.msra.mxu0 %v292
    %613 = vmatpush.msra.mxu0 %v288
    %614 = vmatpush.msra.mxu0 %v284
    %615 = vmatpush.msra.mxu0 %v280
    %616 = vmatpush.msra.mxu0 %v276
    %617 = vmatpush.msra.mxu0 %v272
    %618 = vmatpush.msra.mxu0 %v268
    %619 = vmatpush.msra.mxu0 %v264
    %620 = vmatpush.msra.mxu0 %v260
    %621 = vmatpush.msra.mxu0 %v256
    %622 = vmatpush.msra.mxu0 %v252
    %623 = vmatpush.msra.mxu0 %v248
    %624 = vmatpush.msra.mxu0 %v244
    %625 = vmatpush.msra.mxu0 %v240
    %626 = vmatpush.msra.mxu0 %v236
    %627 = vmatpush.msra.mxu0 %v232
    %628 = vmatmul.f32.gmra.mxu0 %v591
    %v629 = vpop.f32.mrf.mxu0
    %v630 = vadd.f32 0.0, %v629
    %631 = vdwg.mxu0
    %632 = vmatpush.msra.mxu0 %v293
    %633 = vmatpush.msra.mxu0 %v289
    %634 = vmatpush.msra.mxu0 %v285
    %635 = vmatpush.msra.mxu0 %v281
    %636 = vmatpush.msra.mxu0 %v277
    %637 = vmatpush.msra.mxu0 %v273
    %638 = vmatpush.msra.mxu0 %v269
    %639 = vmatpush.msra.mxu0 %v265
    %640 = vmatpush.msra.mxu0 %v261
    %641 = vmatpush.msra.mxu0 %v257
    %642 = vmatpush.msra.mxu0 %v253
    %643 = vmatpush.msra.mxu0 %v249
    %644 = vmatpush.msra.mxu0 %v245
    %645 = vmatpush.msra.mxu0 %v241
    %646 = vmatpush.msra.mxu0 %v237
    %647 = vmatpush.msra.mxu0 %v233
    %648 = vmatmul.f32.gmra.mxu0 %v591
    %v649 = vpop.f32.mrf.mxu0
    %v650 = vadd.f32 0.0, %v649
    %651 = vdwg.mxu0
    %652 = vmatpush.msra.mxu0 %v294
    %653 = vmatpush.msra.mxu0 %v290
    %654 = vmatpush.msra.mxu0 %v286
    %655 = vmatpush.msra.mxu0 %v282
    %656 = vmatpush.msra.mxu0 %v278
    %657 = vmatpush.msra.mxu0 %v274
    %658 = vmatpush.msra.mxu0 %v270
    %659 = vmatpush.msra.mxu0 %v266
    %660 = vmatpush.msra.mxu0 %v262
    %661 = vmatpush.msra.mxu0 %v258
    %662 = vmatpush.msra.mxu0 %v254
    %663 = vmatpush.msra.mxu0 %v250
    %664 = vmatpush.msra.mxu0 %v246
    %665 = vmatpush.msra.mxu0 %v242
    %666 = vmatpush.msra.mxu0 %v238
    %667 = vmatpush.msra.mxu0 %v234
    %668 = vmatmul.f32.gmra.mxu0 %v591
    %v669 = vpop.f32.mrf.mxu0
    %v670 = vadd.f32 0.0, %v669
    %671 = vdwg.mxu0
    %v672 = vadd.f32 %v94, %v610
    %v673 = vadd.f32 %v135, %v630
    %v674 = vadd.f32 %v176, %v650
    %v675 = vadd.f32 %v217, %v670
    %v676 = vtanh.pop %v672
    %v677 = vtanh.pop %v673
    %v678 = vtanh.pop %v674
    %v679 = vtanh.pop %v675
    %v680 = vmul.f32 %v676, 0.5
    %v681 = vadd.f32 %v680, 0.5
    %v682 = vmul.f32 %v677, 0.5
    %v683 = vadd.f32 %v682, 0.5
    %v684 = vmul.f32 %v679, 0.5
    %v685 = vadd.f32 %v684, 0.5
    %v686 = vmul.f32 %v683, %v589
    %v687 = vmul.f32 %v681, %v678
    %v688 = vadd.f32 %v686, %v687
    %v689 = vtanh.pop %v688
    %v690 = vmul.f32 %v685, %v689
    %691 = vmatpush.msra.mxu0 %v291
    %692 = vmatpush.msra.mxu0 %v287
    %693 = vmatpush.msra.mxu0 %v283
    %694 = vmatpush.msra.mxu0 %v279
    %695 = vmatpush.msra.mxu0 %v275
    %696 = vmatpush.msra.mxu0 %v271
    %697 = vmatpush.msra.mxu0 %v267
    %698 = vmatpush.msra.mxu0 %v263
    %699 = vmatpush.msra.mxu0 %v259
    %700 = vmatpush.msra.mxu0 %v255
    %701 = vmatpush.msra.mxu0 %v251
    %702 = vmatpush.msra.mxu0 %v247
    %703 = vmatpush.msra.mxu0 %v243
    %704 = vmatpush.msra.mxu0 %v239
    %705 = vmatpush.msra.mxu0 %v235
    %706 = vmatpush.msra.mxu0 %v231
    %707 = vmatmul.f32.gmra.mxu0 %v690
    %v708 = vpop.f32.mrf.mxu0
    %v709 = vadd.f32 0.0, %v708
    %710 = vdwg.mxu0
    %711 = vmatpush.msra.mxu0 %v292
    %712 = vmatpush.msra.mxu0 %v288
    %713 = vmatpush.msra.mxu0 %v284
    %714 = vmatpush.msra.mxu0 %v280
    %715 = vmatpush.msra.mxu0 %v276
    %716 = vmatpush.msra.mxu0 %v272
    %717 = vmatpush.msra.mxu0 %v268
    %718 = vmatpush.msra.mxu0 %v264
    %719 = vmatpush.msra.mxu0 %v260
    %720 = vmatpush.msra.mxu0 %v256
    %721 = vmatpush.msra.mxu0 %v252
    %722 = vmatpush.msra.mxu0 %v248
    %723 = vmatpush.msra.mxu0 %v244
    %724 = vmatpush.msra.mxu0 %v240
    %725 = vmatpush.msra.mxu0 %v236
    %726 = vmatpush.msra.mxu0 %v232
    %727 = vmatmul.f32.gmra.mxu0 %v690
    %v728 = vpop.f32.mrf.mxu0
    %v729 = vadd.f32 0.0, %v728
    %730 = vdwg.mxu0
    %731 = vmatpush.msra.mxu0 %v293
    %732 = vmatpush.msra.mxu0 %v289
    %733 = vmatpush.msra.mxu0 %v285
    %734 = vmatpush.msra.mxu0 %v281
    %735 = vmatpush.msra.mxu0 %v277
    %736 = vmatpush.msra.mxu0 %v273
    %737 = vmatpush.msra.mxu0 %v269
    %738 = vmatpush.msra.mxu0 %v265
    %739 = vmatpush.msra.mxu0 %v261
    %740 = vmatpush.msra.mxu0 %v257
    %741 = vmatpush.msra.mxu0 %v253
    %742 = vmatpush.msra.mxu0 %v249
    %743 = vmatpush.msra.mxu0 %v245
    %744 = vmatpush.msra.mxu0 %v241
    %745 = vmatpush.msra.mxu0 %v237
    %746 = vmatpush.msra.mxu0 %v233
    %747 = vmatmul.f32.gmra.mxu0 %v690
    %v748 = vpop.f32.mrf.mxu0
    %v749 = vadd.f32 0.0, %v748
    %750 = vdwg.mxu0
    %751 = vmatpush.msra.mxu0 %v294
    %752 = vmatpush.msra.mxu0 %v290
    %753 = vmatpush.msra.mxu0 %v286
    %754 = vmatpush.msra.mxu0 %v282
    %755 = vmatpush.msra.mxu0 %v278
    %756 = vmatpush.msra.mxu0 %v274
    %757 = vmatpush.msra.mxu0 %v270
    %758 = vmatpush.msra.mxu0 %v266
    %759 = vmatpush.msra.mxu0 %v262
    %760 = vmatpush.msra.mxu0 %v258
    %761 = vmatpush.msra.mxu0 %v254
    %762 = vmatpush.msra.mxu0 %v250
    %763 = vmatpush.msra.mxu0 %v246
    %764 = vmatpush.msra.mxu0 %v242
    %765 = vmatpush.msra.mxu0 %v238
    %766 = vmatpush.msra.mxu0 %v234
    %767 = vmatmul.f32.gmra.mxu0 %v690
    %v768 = vpop.f32.mrf.mxu0
    %v769 = vadd.f32 0.0, %v768
    %770 = vdwg.mxu0
    %v771 = vadd.f32 %v97, %v709
    %v772 = vadd.f32 %v138, %v729
    %v773 = vadd.f32 %v179, %v749
    %v774 = vadd.f32 %v220, %v769
    %v775 = vtanh.pop %v771
    %v776 = vtanh.pop %v772
    %v777 = vtanh.pop %v773
    %v778 = vtanh.pop %v774
    %v779 = vmul.f32 %v775, 0.5
    %v780 = vadd.f32 %v779, 0.5
    %v781 = vmul.f32 %v776, 0.5
    %v782 = vadd.f32 %v781, 0.5
    %v783 = vmul.f32 %v778, 0.5
    %v784 = vadd.f32 %v783, 0.5
    %v785 = vmul.f32 %v782, %v688
    %v786 = vmul.f32 %v780, %v777
    %v787 = vadd.f32 %v785, %v786
    %v788 = vtanh.pop %v787
    %v789 = vmul.f32 %v784, %v788
    %790 = vmatpush.msra.mxu0 %v291
    %791 = vmatpush.msra.mxu0 %v287
    %792 = vmatpush.msra.mxu0 %v283
    %793 = vmatpush.msra.mxu0 %v279
    %794 = vmatpush.msra.mxu0 %v275
    %795 = vmatpush.msra.mxu0 %v271
    %796 = vmatpush.msra.mxu0 %v267
    %797 = vmatpush.msra.mxu0 %v263
    %798 = vmatpush.msra.mxu0 %v259
    %799 = vmatpush.msra.mxu0 %v255
    %800 = vmatpush.msra.mxu0 %v251
    %801 = vmatpush.msra.mxu0 %v247
    %802 = vmatpush.msra.mxu0 %v243
    %803 = vmatpush.msra.mxu0 %v239
    %804 = vmatpush.msra.mxu0 %v235
    %805 = vmatpush.msra.mxu0 %v231
    %806 = vmatmul.f32.gmra.mxu0 %v789
    %v807 = vpop.f32.mrf.mxu0
    %v808 = vadd.f32 0.0, %v807
    %809 = vdwg.mxu0
    %810 = vmatpush.msra.mxu0 %v292
    %811 = vmatpush.msra.mxu0 %v288
    %812 = vmatpush.msra.mxu0 %v284
    %813 = vmatpush.msra.mxu0 %v280
    %814 = vmatpush.msra.mxu0 %v276
    %815 = vmatpush.msra.mxu0 %v272
    %816 = vmatpush.msra.mxu0 %v268
    %817 = vmatpush.msra.mxu0 %v264
    %818 = vmatpush.msra.mxu0 %v260
    %819 = vmatpush.msra.mxu0 %v256
    %820 = vmatpush.msra.mxu0 %v252
    %821 = vmatpush.msra.mxu0 %v248
    %822 = vmatpush.msra.mxu0 %v244
    %823 = vmatpush.msra.mxu0 %v240
    %824 = vmatpush.msra.mxu0 %v236
    %825 = vmatpush.msra.mxu0 %v232
    %826 = vmatmul.f32.gmra.mxu0 %v789
    %v827 = vpop.f32.mrf.mxu0
    %v828 = vadd.f32 0.0, %v827
    %829 = vdwg.mxu0
    %830 = vmatpush.msra.mxu0 %v293
    %831 = vmatpush.msra.mxu0 %v289
    %832 = vmatpush.msra.mxu0 %v285
    %833 = vmatpush.msra.mxu0 %v281
    %834 = vmatpush.msra.mxu0 %v277
    %835 = vmatpush.msra.mxu0 %v273
    %836 = vmatpush.msra.mxu0 %v269
    %837 = vmatpush.msra.mxu0 %v265
    %838 = vmatpush.msra.mxu0 %v261
    %839 = vmatpush.msra.mxu0 %v257
    %840 = vmatpush.msra.mxu0 %v253
    %841 = vmatpush.msra.mxu0 %v249
    %842 = vmatpush.msra.mxu0 %v245
    %843 = vmatpush.msra.mxu0 %v241
    %844 = vmatpush.msra.mxu0 %v237
    %845 = vmatpush.msra.mxu0 %v233
    %846 = vmatmul.f32.gmra.mxu0 %v789
    %v847 = vpop.f32.mrf.mxu0
    %v848 = vadd.f32 0.0, %v847
    %849 = vdwg.mxu0
    %850 = vmatpush.msra.mxu0 %v294
    %851 = vmatpush.msra.mxu0 %v290
    %852 = vmatpush.msra.mxu0 %v286
    %853 = vmatpush.msra.mxu0 %v282
    %854 = vmatpush.msra.mxu0 %v278
    %855 = vmatpush.msra.mxu0 %v274
    %856 = vmatpush.msra.mxu0 %v270
    %857 = vmatpush.msra.mxu0 %v266
    %858 = vmatpush.msra.mxu0 %v262
    %859 = vmatpush.msra.mxu0 %v258
    %860 = vmatpush.msra.mxu0 %v254
    %861 = vmatpush.msra.mxu0 %v250
    %862 = vmatpush.msra.mxu0 %v246
    %863 = vmatpush.msra.mxu0 %v242
    %864 = vmatpush.msra.mxu0 %v238
    %865 = vmatpush.msra.mxu0 %v234
    %866 = vmatmul.f32.gmra.mxu0 %v789
    %v867 = vpop.f32.mrf.mxu0
    %v868 = vadd.f32 0.0, %v867
    %869 = vdwg.mxu0
    %v870 = vadd.f32 %v100, %v808
    %v871 = vadd.f32 %v141, %v828
    %v872 = vadd.f32 %v182, %v848
    %v873 = vadd.f32 %v223, %v868
    %v874 = vtanh.pop %v870
    %v875 = vtanh.pop %v871
    %v876 = vtanh.pop %v872
    %v877 = vtanh.pop %v873
    %v878 = vmul.f32 %v874, 0.5
    %v879 = vadd.f32 %v878, 0.5
    %v880 = vmul.f32 %v875, 0.5
    %v881 = vadd.f32 %v880, 0.5
    %v882 = vmul.f32 %v877, 0.5
    %v883 = vadd.f32 %v882, 0.5
    %v884 = vmul.f32 %v881, %v787
    %v885 = vmul.f32 %v879, %v876
    %v886 = vadd.f32 %v884, %v885
    %v887 = vtanh.pop %v886
    %v888 = vmul.f32 %v883, %v887
    %889 = vmatpush.msra.mxu0 %v291
    %890 = vmatpush.msra.mxu0 %v287
    %891 = vmatpush.msra.mxu0 %v283
    %892 = vmatpush.msra.mxu0 %v279
    %893 = vmatpush.msra.mxu0 %v275
    %894 = vmatpush.msra.mxu0 %v271
    %895 = vmatpush.msra.mxu0 %v267
    %896 = vmatpush.msra.mxu0 %v263
    %897 = vmatpush.msra.mxu0 %v259
    %898 = vmatpush.msra.mxu0 %v255
    %899 = vmatpush.msra.mxu0 %v251
    %900 = vmatpush.msra.mxu0 %v247
    %901 = vmatpush.msra.mxu0 %v243
    %902 = vmatpush.msra.mxu0 %v239
    %903 = vmatpush.msra.mxu0 %v235
    %904 = vmatpush.msra.mxu0 %v231
    %905 = vmatmul.f32.gmra.mxu0 %v888
    %v906 = vpop.f32.mrf.mxu0
    %v907 = vadd.f32 0.0, %v906
    %908 = vdwg.mxu0
    %909 = vmatpush.msra.mxu0 %v292
    %910 = vmatpush.msra.mxu0 %v288
    %911 = vmatpush.msra.mxu0 %v284
    %912 = vmatpush.msra.mxu0 %v280
    %913 = vmatpush.msra.mxu0 %v276
    %914 = vmatpush.msra.mxu0 %v272
    %915 = vmatpush.msra.mxu0 %v268
    %916 = vmatpush.msra.mxu0 %v264
    %917 = vmatpush.msra.mxu0 %v260
    %918 = vmatpush.msra.mxu0 %v256
    %919 = vmatpush.msra.mxu0 %v252
    %920 = vmatpush.msra.mxu0 %v248
    %921 = vmatpush.msra.mxu0 %v244
    %922 = vmatpush.msra.mxu0 %v240
    %923 = vmatpush.msra.mxu0 %v236
    %924 = vmatpush.msra.mxu0 %v232
    %925 = vmatmul.f32.gmra.mxu0 %v888
    %v926 = vpop.f32.mrf.mxu0
    %v927 = vadd.f32 0.0, %v926
    %928 = vdwg.mxu0
    %929 = vmatpush.msra.mxu0 %v293
    %930 = vmatpush.msra.mxu0 %v289
    %931 = vmatpush.msra.mxu0 %v285
    %932 = vmatpush.msra.mxu0 %v281
    %933 = vmatpush.msra.mxu0 %v277
    %934 = vmatpush.msra.mxu0 %v273
    %935 = vmatpush.msra.mxu0 %v269
    %936 = vmatpush.msra.mxu0 %v265
    %937 = vmatpush.msra.mxu0 %v261
    %938 = vmatpush.msra.mxu0 %v257
    %939 = vmatpush.msra.mxu0 %v253
    %940 = vmatpush.msra.mxu0 %v249
    %941 = vmatpush.msra.mxu0 %v245
    %942 = vmatpush.msra.mxu0 %v241
    %943 = vmatpush.msra.mxu0 %v237
    %944 = vmatpush.msra.mxu0 %v233
    %945 = vmatmul.f32.gmra.mxu0 %v888
    %v946 = vpop.f32.mrf.mxu0
    %v947 = vadd.f32 0.0, %v946
    %948 = vdwg.mxu0
    %949 = vmatpush.msra.mxu0 %v294
    %950 = vmatpush.msra.mxu0 %v290
    %951 = vmatpush.msra.mxu0 %v286
    %952 = vmatpush.msra.mxu0 %v282
    %953 = vmatpush.msra.mxu0 %v278
    %954 = vmatpush.msra.mxu0 %v274
    %955 = vmatpush.msra.mxu0 %v270
    %956 = vmatpush.msra.mxu0 %v266
    %957 = vmatpush.msra.mxu0 %v262
    %958 = vmatpush.msra.mxu0 %v258
    %959 = vmatpush.msra.mxu0 %v254
    %960 = vmatpush.msra.mxu0 %v250
    %961 = vmatpush.msra.mxu0 %v246
    %962 = vmatpush.msra.mxu0 %v242
    %963 = vmatpush.msra.mxu0 %v238
    %964 = vmatpush.msra.mxu0 %v234
    %965 = vmatmul.f32.gmra.mxu0 %v888
    %v966 = vpop.f32.mrf.mxu0
    %v967 = vadd.f32 0.0, %v966
    %968 = vdwg.mxu0
    %v969 = vadd.f32 %v103, %v907
    %v970 = vadd.f32 %v144, %v927
    %v971 = vadd.f32 %v185, %v947
    %v972 = vadd.f32 %v226, %v967
    %v973 = vtanh.pop %v969
    %v974 = vtanh.pop %v970
    %v975 = vtanh.pop %v971
    %v976 = vtanh.pop %v972
    %v977 = vmul.f32 %v973, 0.5
    %v978 = vadd.f32 %v977, 0.5
    %v979 = vmul.f32 %v974, 0.5
    %v980 = vadd.f32 %v979, 0.5
    %v981 = vmul.f32 %v976, 0.5
    %v982 = vadd.f32 %v981, 0.5
    %v983 = vmul.f32 %v980, %v886
    %v984 = vmul.f32 %v978, %v975
    %v985 = vadd.f32 %v983, %v984
    %v986 = vtanh.pop %v985
    %v987 = vmul.f32 %v982, %v986
    %988 = vmatpush.msra.mxu0 %v291
    %989 = vmatpush.msra.mxu0 %v287
    %990 = vmatpush.msra.mxu0 %v283
    %991 = vmatpush.msra.mxu0 %v279
    %992 = vmatpush.msra.mxu0 %v275
    %993 = vmatpush.msra.mxu0 %v271
    %994 = vmatpush.msra.mxu0 %v267
    %995 = vmatpush.msra.mxu0 %v263
    %996 = vmatpush.msra.mxu0 %v259
    %997 = vmatpush.msra.mxu0 %v255
    %998 = vmatpush.msra.mxu0 %v251
    %999 = vmatpush.msra.mxu0 %v247
    %1000 = vmatpush.msra.mxu0 %v243
    %1001 = vmatpush.msra.mxu0 %v239
    %1002 = vmatpush.msra.mxu0 %v235
    %1003 = vmatpush.msra.mxu0 %v231
    %1004 = vmatmul.f32.gmra.mxu0 %v987
    %v1005 = vpop.f32.mrf.mxu0
    %v1006 = vadd.f32 0.0, %v1005
    %1007 = vdwg.mxu0
    %1008 = vmatpush.msra.mxu0 %v292
    %1009 = vmatpush.msra.mxu0 %v288
    %1010 = vmatpush.msra.mxu0 %v284
    %1011 = vmatpush.msra.mxu0 %v280
    %1012 = vmatpush.msra.mxu0 %v276
    %1013 = vmatpush.msra.mxu0 %v272
    %1014 = vmatpush.msra.mxu0 %v268
    %1015 = vmatpush.msra.mxu0 %v264
    %1016 = vmatpush.msra.mxu0 %v260
    %1017 = vmatpush.msra.mxu0 %v256
    %1018 = vmatpush.msra.mxu0 %v252
    %1019 = vmatpush.msra.mxu0 %v248
    %1020 = vmatpush.msra.mxu0 %v244
    %1021 = vmatpush.msra.mxu0 %v240
    %1022 = vmatpush.msra.mxu0 %v236
    %1023 = vmatpush.msra.mxu0 %v232
    %1024 = vmatmul.f32.gmra.mxu0 %v987
    %v1025 = vpop.f32.mrf.mxu0
    %v1026 = vadd.f32 0.0, %v1025
    %1027 = vdwg.mxu0
    %1028 = vmatpush.msra.mxu0 %v293
    %1029 = vmatpush.msra.mxu0 %v289
    %1030 = vmatpush.msra.mxu0 %v285
    %1031 = vmatpush.msra.mxu0 %v281
    %1032 = vmatpush.msra.mxu0 %v277
    %1033 = vmatpush.msra.mxu0 %v273
    %1034 = vmatpush.msra.mxu0 %v269
    %1035 = vmatpush.msra.mxu0 %v265
    %1036 = vmatpush.msra.mxu0 %v261
    %1037 = vmatpush.msra.mxu0 %v257
    %1038 = vmatpush.msra.mxu0 %v253
    %1039 = vmatpush.msra.mxu0 %v249
    %1040 = vmatpush.msra.mxu0 %v245
    %1041 = vmatpush.msra.mxu0 %v241
    %1042 = vmatpush.msra.mxu0 %v237
    %1043 = vmatpush.msra.mxu0 %v233
    %1044 = vmatmul.f32.gmra.mxu0 %v987
    %v1045 = vpop.f32.mrf.mxu0
    %v1046 = vadd.f32 0.0, %v1045
    %1047 = vdwg.mxu0
    %1048 = vmatpush.msra.mxu0 %v294
    %1049 = vmatpush.msra.mxu0 %v290
    %1050 = vmatpush.msra.mxu0 %v286
    %1051 = vmatpush.msra.mxu0 %v282
    %1052 = vmatpush.msra.mxu0 %v278
    %1053 = vmatpush.msra.mxu0 %v274
    %1054 = vmatpush.msra.mxu0 %v270
    %1055 = vmatpush.msra.mxu0 %v266
    %1056 = vmatpush.msra.mxu0 %v262
    %1057 = vmatpush.msra.mxu0 %v258
    %1058 = vmatpush.msra.mxu0 %v254
    %1059 = vmatpush.msra.mxu0 %v250
    %1060 = vmatpush.msra.mxu0 %v246
    %1061 = vmatpush.msra.mxu0 %v242
    %1062 = vmatpush.msra.mxu0 %v238
    %1063 = vmatpush.msra.mxu0 %v234
    %1064 = vmatmul.f32.gmra.mxu0 %v987
    %v1065 = vpop.f32.mrf.mxu0
    %v1066 = vadd.f32 0.0, %v1065
    %1067 = vdwg.mxu0
    %v1068 = vadd.f32 %v106, %v1006
    %v1069 = vadd.f32 %v147, %v1026
    %v1070 = vadd.f32 %v188, %v1046
    %v1071 = vadd.f32 %v229, %v1066
    %v1072 = vtanh.pop %v1068
    %v1073 = vtanh.pop %v1069
    %v1074 = vtanh.pop %v1070
    %v1075 = vtanh.pop %v1071
    %v1076 = vmul.f32 %v1072, 0.5
    %v1077 = vadd.f32 %v1076, 0.5
    %v1078 = vmul.f32 %v1073, 0.5
    %v1079 = vadd.f32 %v1078, 0.5
    %v1080 = vmul.f32 %v1075, 0.5
    %v1081 = vadd.f32 %v1080, 0.5
    %v1082 = vmul.f32 %v1079, %v985
    %v1083 = vmul.f32 %v1077, %v1074
    %v1084 = vadd.f32 %v1082, %v1083
    %v1085 = vtanh.pop %v1084
    %v1086 = vmul.f32 %v1081, %v1085
    %v1087 = vld [vmem:[#allocation2 + $0x20] sm:$0xff]
    %v1088 = vld [vmem:[#allocation2 + $0x48] sm:$0xff]
    %v1089 = vld [vmem:[#allocation2 + $0x70] sm:$0xff]
    %v1090 = vld [vmem:[#allocation2 + $0x98] sm:$0xff]
    %v1091 = vld [vmem:[#allocation2 + $0xc0] sm:$0xff]
    %v1092 = vld [vmem:[#allocation2 + $0xe8] sm:$0xff]
    %v1093 = vld [vmem:[#allocation2 + $0x110] sm:$0xff]
    %v1094 = vld [vmem:[#allocation2 + $0x138] sm:$0xff]
    %v1095 = vld [vmem:[#allocation2 + $0x160] sm:$0xff]
    %v1096 = vld [vmem:[#allocation2 + $0x188] sm:$0xff]
    %v1097 = vld [vmem:[#allocation2 + $0x1b0] sm:$0xff]
    %v1098 = vld [vmem:[#allocation2 + $0x1d8] sm:$0xff]
    %v1099 = vld [vmem:[#allocation2 + $0x200] sm:$0xff]
    %v1100 = vld [vmem:[#allocation2 + $0x228] sm:$0xff]
    %v1101 = vld [vmem:[#allocation2 + $0x250] sm:$0xff]
    %v1102 = vld [vmem:[#allocation2 + $0x278] sm:$0xff]
    %v1103 = vld [vmem:[%s1 + $0x7] ss:$0 sm:$0xff]
    %v1104 = vld [vmem:[%s1 + $0xf] ss:$0 sm:$0xff]
    %v1105 = vld [vmem:[%s1 + $0x17] ss:$0 sm:$0xff]
    %v1106 = vmax.f32 %v1086, 0.0
    %1107 = vmatpush.msra.mxu0 %v1102
    %1108 = vmatpush.msra.mxu0 %v1101
    %1109 = vmatpush.msra.mxu0 %v1100
    %1110 = vmatpush.msra.mxu0 %v1099
    %1111 = vmatpush.msra.mxu0 %v1098
    %1112 = vmatpush.msra.mxu0 %v1097
    %1113 = vmatpush.msra.mxu0 %v1096
    %1114 = vmatpush.msra.mxu0 %v1095
    %1115 = vmatpush.msra.mxu0 %v1094
    %1116 = vmatpush.msra.mxu0 %v1093
    %1117 = vmatpush.msra.mxu0 %v1092
    %1118 = vmatpush.msra.mxu0 %v1091
    %1119 = vmatpush.msra.mxu0 %v1090
    %1120 = vmatpush.msra.mxu0 %v1089
    %1121 = vmatpush.msra.mxu0 %v1088
    %1122 = vmatpush.msra.mxu0 %v1087
    %1123 = vmatmul.f32.gmra.mxu0 %v1106
    %v1124 = vpop.f32.mrf.mxu0
    %v1125 = vadd.f32 %v1103, %v1124
    %1126 = vdwg.mxu0
    %v1127 = vmax.f32 %v1125, 0.0
    %v1128 = vmul.f32 %v1127, %v1104
    %1129 = vadd.xlane.f32.xlu0 %v1128
    %v1130 = vpop.xlane.xlu0 %1129
    %v1131 = vadd.f32 %v1130, %v1105
    %vm1132 = vcmask 7168
    %1133 = vst.msk [vmem:[%s3] sm:$0xff] %vm1132, %v1131
    // Predicated region
    $region18: #{lstm1_forward.1} parent=1 // pred_check
      _
    $region19: #{lstm1_forward.1} parent=1 // pred_check_branch
      %1135 = sbr.rel (0) target = $region21
    $region20: #{lstm1_forward.1} parent=1 // pred_region
      _
    $region21: #{lstm1_forward.1} parent=1 // pred_fallthru
      _
    // Predicated region
    $region22: #{lstm1_forward.1} parent=1 // pred_check
      _
    $region23: #{lstm1_forward.1} parent=1 // pred_check_branch
      %1137 = sbr.rel (0) target = $region25
    $region24: #{lstm1_forward.1} parent=1 // pred_region
      _
    $region25: #{lstm1_forward.1} parent=1 // pred_fallthru
      _
    %1138 = vsyncpa [#allocation3], 1

</llo_original>
